<compile_context>
chip_gen: v7x
topology: tpu7x:2x2x1
jax: 0.10.0
libtpu: 0.0.40
codegen_flags: <defaults>
</compile_context>

<pallas_src>
import functools

import jax
import jax.numpy as jnp
from jax import lax
from jax.experimental import pallas as pl
from jax.experimental.pallas import tpu as pltpu


# ------------------- fused conv3 + fc1 + fc2 + dueling head -------------------

def _fused_head_kernel(x2_ref, xyz_ref, w3s_ref, b3_ref, w1_ref, b1_ref,
                       w2m_ref, w2x_ref, b2_ref, wva_ref, bva_ref, o_ref):
    """Single VMEM-resident kernel for everything after conv2 — 4 MXU dots.

    x2_ref : (TB, 1024) bf16  relu(conv2) output, NHWC row-major flatten
    xyz_ref: (TB, 3)    f32
    w3s_ref: (1024, 256) bf16  conv3 weight scattered per output position/ch
    b3_ref : (1, 256)    f32   conv3 bias tiled over the 4 output positions
    w1_ref : (256, 512)  bf16  fc1 weight re-ordered to match w3s column order
    b1_ref : (1, 512)    f32
    w2m_ref: (512, 256)  bf16  fc2 rows for the fc1 features (MXU, K=512)
    w2x_ref: (3, 256)    f32   fc2 rows for xyz (VPU broadcast FMAs)
    b2_ref : (1, 256)    f32
    wva_ref: (256, 128)  bf16  [V | A | zero-pad] fused head (lane-dense)
    bva_ref: (1, 128)    f32
    o_ref  : (TB, 128)   f32   col 0 = V, cols 1..n_actions = A
    """
    f32 = jnp.float32
    bf16 = jnp.bfloat16

    # conv3 (3x3, stride 1) + ReLU as one dense dot over the scattered weight.
    y3 = jnp.dot(x2_ref[...], w3s_ref[...], preferred_element_type=f32) + b3_ref[...]
    y3 = jnp.maximum(y3, 0.0).astype(bf16)                        # (TB, 256)

    # fc1 + ReLU (row order of w1 matches y3's (oh, ow, c) column order).
    h1 = jnp.dot(y3, w1_ref[...], preferred_element_type=f32) + b1_ref[...]
    h1 = jnp.maximum(h1, 0.0).astype(bf16)                        # (TB, 512)

    # fc2 with split K: lane-aligned K=512 on the MXU, the 3 xyz columns as
    # cheap VPU broadcast multiply-adds (replaces the runtime concat).
    acc2 = jnp.dot(h1, w2m_ref[...], preferred_element_type=f32) + b2_ref[...]
    xyz = xyz_ref[...]
    acc2 = acc2 + xyz[:, 0:1] * w2x_ref[0:1, :]
    acc2 = acc2 + xyz[:, 1:2] * w2x_ref[1:2, :]
    acc2 = acc2 + xyz[:, 2:3] * w2x_ref[2:3, :]
    h2 = jnp.maximum(acc2, 0.0).astype(bf16)                      # (TB, 256)

    # Fused dueling V/A head, zero-padded to a 128-lane-dense output block.
    o_ref[...] = jnp.dot(h2, wva_ref[...], preferred_element_type=f32) + bva_ref[...]


def _bcast_spec(shape):
    zeros = (0,) * len(shape)
    return pl.BlockSpec(shape, lambda m: zeros)


def _pick_batch_tile(B):
    """Sublane-aligned batch tile.

    Small B: whole batch (single step). Larger B: multiple of 8 (unmasked
    output vst), and at least 2 grid steps so dimension_semantics=("parallel",)
    can shard the fused head across v7x's two TensorCores; the 512-row cap
    keeps the per-step VMEM footprint trivial on every generation.
    """
    if B <= 8:
        return B
    half = -(-B // 2)                 # cdiv(B, 2)
    half = -(-half // 8) * 8          # round up to sublane multiple
    return min(half, 512)


def dueling_head_pallas(x2_flat_bf16, xyz, fp):
    """x2_flat_bf16: (B, H2*W2*64) bf16 relu(conv2), NHWC flatten. -> (B, 128) f32."""
    B, K2 = x2_flat_bf16.shape
    tb = _pick_batch_tile(B)
    grid = (pl.cdiv(B, tb),)
    # Weight blocks are grid-invariant; left at default buffering (footprint is
    # only ~1.1 MiB of bf16 weights, far below scoped VMEM on v5e/v6e/v7x).
    in_specs = [
        pl.BlockSpec((tb, K2), lambda m: (m, 0)),
        pl.BlockSpec((tb, 3), lambda m: (m, 0)),
        _bcast_spec(fp["w3s"].shape),
        _bcast_spec(fp["b3"].shape),
        _bcast_spec(fp["w1"].shape),
        _bcast_spec(fp["b1"].shape),
        _bcast_spec(fp["w2m"].shape),
        _bcast_spec(fp["w2x"].shape),
        _bcast_spec(fp["b2"].shape),
        _bcast_spec(fp["wva"].shape),
        _bcast_spec(fp["bva"].shape),
    ]
    return pl.pallas_call(
        _fused_head_kernel,
        out_shape=jax.ShapeDtypeStruct((B, 128), jnp.float32),
        grid=grid,
        in_specs=in_specs,
        out_specs=pl.BlockSpec((tb, 128), lambda m: (m, 0)),
        compiler_params=pltpu.CompilerParams(
            dimension_semantics=("parallel",)),   # shards batch across TCs on v7x
    )(x2_flat_bf16, xyz, fp["w3s"], fp["b3"], fp["w1"], fp["b1"],
      fp["w2m"], fp["w2x"], fp["b2"], fp["wva"], fp["bva"])


# ------------------------------ parameters ------------------------------------

def init_params(key, in_channels, n_actions, fc_input_dims):
    ks = jax.random.split(key, 14)

    def u(k, shape, fan_in):
        bound = 1.0 / jnp.sqrt(jnp.float32(fan_in))
        return jax.random.uniform(k, shape, jnp.float32, -bound, bound)

    p = {}
    p["conv1_w"] = u(ks[0], (8, 8, in_channels, 32), 8 * 8 * in_channels)
    p["conv1_b"] = u(ks[1], (32,), 8 * 8 * in_channels)
    p["conv2_w"] = u(ks[2], (4, 4, 32, 64), 4 * 4 * 32)
    p["conv2_b"] = u(ks[3], (64,), 4 * 4 * 32)
    p["conv3_w"] = u(ks[4], (3, 3, 64, 64), 3 * 3 * 64)
    p["conv3_b"] = u(ks[5], (64,), 3 * 3 * 64)
    p["fc1_w"] = u(ks[6], (fc_input_dims, 512), fc_input_dims)
    p["fc1_b"] = u(ks[7], (512,), fc_input_dims)
    p["fc2_w"] = u(ks[8], (512 + 3, 256), 512 + 3)     # nn.Linear(515, 256)
    p["fc2_b"] = u(ks[9], (256,), 512 + 3)
    p["V_w"] = u(ks[10], (256, 1), 256)
    p["V_b"] = u(ks[11], (1,), 256)
    p["A_w"] = u(ks[12], (256, n_actions), 256)
    p["A_b"] = u(ks[13], (n_actions,), 256)
    return p


def prepare_fast_params(params, n_actions, conv2_out_hw=(4, 4), conv3_out_hw=(2, 2)):
    """One-time weight re-layout + bf16 cast for the fused kernel (done at init)."""
    bf16 = jnp.bfloat16
    h2, w2 = conv2_out_hw
    oh3, ow3 = conv3_out_hw
    kh, kw, cin, cout = params["conv3_w"].shape

    # conv3 as a single scattered matrix over the NHWC-flattened conv2 output:
    #   W3s[((oh+i)*W2 + (ow+j))*Cin + ci, (oh*OW3 + ow)*Cout + co] = w3[i,j,ci,co]
    w3 = params["conv3_w"]
    w3s = jnp.zeros((h2 * w2 * cin, oh3 * ow3 * cout), jnp.float32)
    for oh in range(oh3):
        for ow in range(ow3):
            col = (oh * ow3 + ow) * cout
            for i in range(kh):
                for j in range(kw):
                    row = ((oh + i) * w2 + (ow + j)) * cin
                    w3s = w3s.at[row:row + cin, col:col + cout].set(w3[i, j])
    b3 = jnp.tile(params["conv3_b"], oh3 * ow3).reshape(1, oh3 * ow3 * cout)

    # fc1 rows are in PyTorch NCHW-flatten order (c*OH*OW + oh*OW + ow); re-order
    # them to the kernel's (oh, ow, c) column order of y3 -> no runtime transpose.
    w1 = (params["fc1_w"].reshape(cout, oh3, ow3, 512)
          .transpose(1, 2, 0, 3).reshape(oh3 * ow3 * cout, 512))

    # fc2 split: rows 0..511 multiply the fc1 features, rows 512..514 the xyz.
    w2m = params["fc2_w"][:512]
    w2x = params["fc2_w"][512:]

    # Fused + zero-padded (128-lane-dense) dueling head.
    n_head = 1 + n_actions
    wva = jnp.concatenate([params["V_w"], params["A_w"]], axis=1)
    wva = jnp.pad(wva, ((0, 0), (0, 128 - n_head)))
    bva = jnp.concatenate([params["V_b"], params["A_b"]], axis=0)
    bva = jnp.pad(bva, (0, 128 - n_head))

    return {
        "conv1_w": params["conv1_w"], "conv1_b": params["conv1_b"],
        "conv2_w": params["conv2_w"], "conv2_b": params["conv2_b"],
        "w3s": w3s.astype(bf16),
        "b3": b3,
        "w1": w1.astype(bf16),
        "b1": params["fc1_b"].reshape(1, 512),
        "w2m": w2m.astype(bf16),
        "w2x": w2x,                                   # stays f32 (VPU path)
        "b2": params["fc2_b"].reshape(1, 256),
        "wva": wva.astype(bf16),
        "bva": bva.reshape(1, 128),
    }


# ------------------------------ forward pass -----------------------------------

def dueling_dqn_forward(fast_params, image_state_nchw, xyz_state, n_actions):
    fp = fast_params
    # conv1 / conv2 via XLA's native conv (at tiny batch this beats im2col +
    # extra pallas_call launches). NCHW->NHWC handled inside the conv.
    x = lax.conv_general_dilated(
        image_state_nchw, fp["conv1_w"], window_strides=(4, 4), padding="VALID",
        dimension_numbers=("NCHW", "HWIO", "NHWC"))
    x = jax.nn.relu(x + fp["conv1_b"])
    x = lax.conv_general_dilated(
        x, fp["conv2_w"], window_strides=(2, 2), padding="VALID",
        dimension_numbers=("NHWC", "HWIO", "NHWC"))
    x = jax.nn.relu(x + fp["conv2_b"])
    B = x.shape[0]
    # Lane-dense (B, H2*W2*64) bf16 slab; reshape/cast fuse into conv2's epilogue.
    x2_flat = x.reshape(B, -1).astype(jnp.bfloat16)
    # Everything after conv2 runs inside one fused Pallas kernel.
    va = dueling_head_pallas(x2_flat, xyz_state, fp)
    return va[:, :1], va[:, 1:1 + n_actions]


# --------------------------- pure-JAX reference ---------------------------------

def reference_forward(params, image_state_nchw, xyz_state):
    x = jnp.transpose(image_state_nchw, (0, 2, 3, 1))

    def conv(x, w, b, s):
        y = lax.conv_general_dilated(
            x, w, window_strides=s, padding="VALID",
            dimension_numbers=("NHWC", "HWIO", "NHWC"))
        return y + b

    x = jax.nn.relu(conv(x, params["conv1_w"], params["conv1_b"], (4, 4)))
    x = jax.nn.relu(conv(x, params["conv2_w"], params["conv2_b"], (2, 2)))
    x = conv(x, params["conv3_w"], params["conv3_b"], (1, 1))
    B = x.shape[0]
    x = jnp.transpose(x, (0, 3, 1, 2)).reshape(B, -1)   # PyTorch NCHW flatten
    x = jax.nn.relu(x)
    x = jax.nn.relu(x @ params["fc1_w"] + params["fc1_b"])
    x = jnp.concatenate([x, xyz_state], axis=1)
    x = jax.nn.relu(x @ params["fc2_w"] + params["fc2_b"])
    V = x @ params["V_w"] + params["V_b"]
    A = x @ params["A_w"] + params["A_b"]
    return V, A


# ---------------------------------- main ----------------------------------------

if __name__ == "__main__":
    key = jax.random.PRNGKey(0)
    k_img, k_xyz, k_par = jax.random.split(key, 3)

    # image_input_dims = (4, 48, 48): spatial 48 -> 11 -> 4 -> 2, fc_input = 256.
    B, C, H, W = 2, 4, 48, 48
    n_actions = 4
    fc_input_dims = 64 * 2 * 2

    image_state = jax.random.uniform(k_img, (B, C, H, W), jnp.float32)
    xyz_state = jax.random.normal(k_xyz, (B, 3), jnp.float32)
    params = init_params(k_par, C, n_actions, fc_input_dims)
    fast_params = prepare_fast_params(params, n_actions,
                                      conv2_out_hw=(4, 4), conv3_out_hw=(2, 2))

    fwd = jax.jit(functools.partial(dueling_dqn_forward, n_actions=n_actions))
    V, A = fwd(fast_params, image_state, xyz_state)
    jax.block_until_ready((V, A))

    V_ref, A_ref = reference_forward(params, image_state, xyz_state)
    assert V.shape == (B, 1) and A.shape == (B, n_actions)
    assert bool(jnp.all(jnp.isfinite(V))) and bool(jnp.all(jnp.isfinite(A)))
    assert jnp.allclose(V, V_ref, rtol=1e-2, atol=1e-2), \
        f"V mismatch, max abs err {float(jnp.max(jnp.abs(V - V_ref)))}"
    assert jnp.allclose(A, A_ref, rtol=1e-2, atol=1e-2), \
        f"A mismatch, max abs err {float(jnp.max(jnp.abs(A - A_ref)))}"

    print("KERNEL_OK")
</pallas_src>

<mosaic_0001>
module attributes {stable_mosaic.version = 11 : i64} {
  func.func @_fused_head_kernel(%arg0: i32, %arg1: memref<2x1024xbf16, #tpu.memory_space<vmem>>, %arg2: memref<2x3xf32, #tpu.memory_space<vmem>>, %arg3: memref<1024x256xbf16, #tpu.memory_space<vmem>>, %arg4: memref<1x256xf32, #tpu.memory_space<vmem>>, %arg5: memref<256x512xbf16, #tpu.memory_space<vmem>>, %arg6: memref<1x512xf32, #tpu.memory_space<vmem>>, %arg7: memref<512x256xbf16, #tpu.memory_space<vmem>>, %arg8: memref<3x256xf32, #tpu.memory_space<vmem>>, %arg9: memref<1x256xf32, #tpu.memory_space<vmem>>, %arg10: memref<256x128xbf16, #tpu.memory_space<vmem>>, %arg11: memref<1x128xf32, #tpu.memory_space<vmem>>, %arg12: memref<2x128xf32, #tpu.memory_space<vmem>>) attributes {dimension_semantics = [#tpu.dimension_semantics<parallel>], iteration_bounds = array<i64: 1>, scalar_prefetch = 0 : i64, scratch_operands = 0 : i64, tpu.core_type = #tpu.core_type<tc>, window_params = [{transform_indices = @transform_0, window_bounds = array<i64: 2, 1024>}, {transform_indices = @transform_1, window_bounds = array<i64: 2, 3>}, {pipeline_mode = #tpu.pipeline_mode<synchronous>, transform_indices = @transform_2, window_bounds = array<i64: 1024, 256>}, {pipeline_mode = #tpu.pipeline_mode<synchronous>, transform_indices = @transform_3, window_bounds = array<i64: 1, 256>}, {pipeline_mode = #tpu.pipeline_mode<synchronous>, transform_indices = @transform_4, window_bounds = array<i64: 256, 512>}, {pipeline_mode = #tpu.pipeline_mode<synchronous>, transform_indices = @transform_5, window_bounds = array<i64: 1, 512>}, {pipeline_mode = #tpu.pipeline_mode<synchronous>, transform_indices = @transform_6, window_bounds = array<i64: 512, 256>}, {pipeline_mode = #tpu.pipeline_mode<synchronous>, transform_indices = @transform_7, window_bounds = array<i64: 3, 256>}, {pipeline_mode = #tpu.pipeline_mode<synchronous>, transform_indices = @transform_8, window_bounds = array<i64: 1, 256>}, {pipeline_mode = #tpu.pipeline_mode<synchronous>, transform_indices = @transform_9, window_bounds = array<i64: 256, 128>}, {pipeline_mode = #tpu.pipeline_mode<synchronous>, transform_indices = @transform_10, window_bounds = array<i64: 1, 128>}, {transform_indices = @transform_11, window_bounds = array<i64: 2, 128>}]} {
    %c0 = arith.constant 0 : index
    %c0_0 = arith.constant 0 : index
    %0 = vector.load %arg1[%c0, %c0_0] : memref<2x1024xbf16, #tpu.memory_space<vmem>>, vector<2x1024xbf16>
    %c0_1 = arith.constant 0 : index
    %c0_2 = arith.constant 0 : index
    %1 = vector.load %arg3[%c0_1, %c0_2] : memref<1024x256xbf16, #tpu.memory_space<vmem>>, vector<1024x256xbf16>
    %cst = arith.constant dense<0.000000e+00> : vector<2x256xf32>
    %2 = tpu.matmul %0, %1, %cst {dimension_numbers = #tpu.dot_dimension_numbers<[1], [0], [0], [1], [0, 0, 1, 1], [], []>} : vector<2x1024xbf16>, vector<1024x256xbf16>, vector<2x256xf32> -> vector<2x256xf32>
    %c0_3 = arith.constant 0 : index
    %c0_4 = arith.constant 0 : index
    %3 = vector.load %arg4[%c0_3, %c0_4] : memref<1x256xf32, #tpu.memory_space<vmem>>, vector<1x256xf32>
    %4 = vector.broadcast %3 : vector<1x256xf32> to vector<2x256xf32>
    %5 = arith.addf %2, %4 : vector<2x256xf32>
    %cst_5 = arith.constant 0.000000e+00 : f32
    %6 = vector.broadcast %cst_5 : f32 to vector<2x256xf32>
    %7 = arith.maximumf %5, %6 : vector<2x256xf32>
    %8 = arith.truncf %7 : vector<2x256xf32> to vector<2x256xbf16>
    %c0_6 = arith.constant 0 : index
    %c0_7 = arith.constant 0 : index
    %9 = vector.load %arg5[%c0_6, %c0_7] : memref<256x512xbf16, #tpu.memory_space<vmem>>, vector<256x512xbf16>
    %cst_8 = arith.constant dense<0.000000e+00> : vector<2x512xf32>
    %10 = tpu.matmul %8, %9, %cst_8 {dimension_numbers = #tpu.dot_dimension_numbers<[1], [0], [0], [1], [0, 0, 1, 1], [], []>} : vector<2x256xbf16>, vector<256x512xbf16>, vector<2x512xf32> -> vector<2x512xf32>
    %c0_9 = arith.constant 0 : index
    %c0_10 = arith.constant 0 : index
    %11 = vector.load %arg6[%c0_9, %c0_10] : memref<1x512xf32, #tpu.memory_space<vmem>>, vector<1x512xf32>
    %12 = vector.broadcast %11 : vector<1x512xf32> to vector<2x512xf32>
    %13 = arith.addf %10, %12 : vector<2x512xf32>
    %cst_11 = arith.constant 0.000000e+00 : f32
    %14 = vector.broadcast %cst_11 : f32 to vector<2x512xf32>
    %15 = arith.maximumf %13, %14 : vector<2x512xf32>
    %16 = arith.truncf %15 : vector<2x512xf32> to vector<2x512xbf16>
    %c0_12 = arith.constant 0 : index
    %c0_13 = arith.constant 0 : index
    %17 = vector.load %arg7[%c0_12, %c0_13] : memref<512x256xbf16, #tpu.memory_space<vmem>>, vector<512x256xbf16>
    %cst_14 = arith.constant dense<0.000000e+00> : vector<2x256xf32>
    %18 = tpu.matmul %16, %17, %cst_14 {dimension_numbers = #tpu.dot_dimension_numbers<[1], [0], [0], [1], [0, 0, 1, 1], [], []>} : vector<2x512xbf16>, vector<512x256xbf16>, vector<2x256xf32> -> vector<2x256xf32>
    %c0_15 = arith.constant 0 : index
    %c0_16 = arith.constant 0 : index
    %19 = vector.load %arg9[%c0_15, %c0_16] : memref<1x256xf32, #tpu.memory_space<vmem>>, vector<1x256xf32>
    %20 = vector.broadcast %19 : vector<1x256xf32> to vector<2x256xf32>
    %21 = arith.addf %18, %20 : vector<2x256xf32>
    %c0_17 = arith.constant 0 : index
    %c0_18 = arith.constant 0 : index
    %22 = vector.load %arg2[%c0_17, %c0_18] : memref<2x3xf32, #tpu.memory_space<vmem>>, vector<2x3xf32>
    %23 = vector.extract_strided_slice %22 {offsets = [0, 0], sizes = [2, 1], strides = [1, 1]} : vector<2x3xf32> to vector<2x1xf32>
    %c0_19 = arith.constant 0 : index
    %c0_20 = arith.constant 0 : index
    %24 = vector.load %arg8[%c0_19, %c0_20] : memref<3x256xf32, #tpu.memory_space<vmem>>, vector<1x256xf32>
    %25 = vector.broadcast %23 : vector<2x1xf32> to vector<2x256xf32>
    %26 = vector.broadcast %24 : vector<1x256xf32> to vector<2x256xf32>
    %27 = arith.mulf %25, %26 : vector<2x256xf32>
    %28 = arith.addf %21, %27 : vector<2x256xf32>
    %29 = vector.extract_strided_slice %22 {offsets = [0, 1], sizes = [2, 1], strides = [1, 1]} : vector<2x3xf32> to vector<2x1xf32>
    %c1 = arith.constant 1 : index
    %c0_21 = arith.constant 0 : index
    %30 = vector.load %arg8[%c1, %c0_21] : memref<3x256xf32, #tpu.memory_space<vmem>>, vector<1x256xf32>
    %31 = vector.broadcast %29 : vector<2x1xf32> to vector<2x256xf32>
    %32 = vector.broadcast %30 : vector<1x256xf32> to vector<2x256xf32>
    %33 = arith.mulf %31, %32 : vector<2x256xf32>
    %34 = arith.addf %28, %33 : vector<2x256xf32>
    %35 = vector.extract_strided_slice %22 {offsets = [0, 2], sizes = [2, 1], strides = [1, 1]} : vector<2x3xf32> to vector<2x1xf32>
    %c2 = arith.constant 2 : index
    %c0_22 = arith.constant 0 : index
    %36 = vector.load %arg8[%c2, %c0_22] : memref<3x256xf32, #tpu.memory_space<vmem>>, vector<1x256xf32>
    %37 = vector.broadcast %35 : vector<2x1xf32> to vector<2x256xf32>
    %38 = vector.broadcast %36 : vector<1x256xf32> to vector<2x256xf32>
    %39 = arith.mulf %37, %38 : vector<2x256xf32>
    %40 = arith.addf %34, %39 : vector<2x256xf32>
    %cst_23 = arith.constant 0.000000e+00 : f32
    %41 = vector.broadcast %cst_23 : f32 to vector<2x256xf32>
    %42 = arith.maximumf %40, %41 : vector<2x256xf32>
    %43 = arith.truncf %42 : vector<2x256xf32> to vector<2x256xbf16>
    %c0_24 = arith.constant 0 : index
    %c0_25 = arith.constant 0 : index
    %44 = vector.load %arg10[%c0_24, %c0_25] : memref<256x128xbf16, #tpu.memory_space<vmem>>, vector<256x128xbf16>
    %cst_26 = arith.constant dense<0.000000e+00> : vector<2x128xf32>
    %45 = tpu.matmul %43, %44, %cst_26 {dimension_numbers = #tpu.dot_dimension_numbers<[1], [0], [0], [1], [0, 0, 1, 1], [], []>} : vector<2x256xbf16>, vector<256x128xbf16>, vector<2x128xf32> -> vector<2x128xf32>
    %c0_27 = arith.constant 0 : index
    %c0_28 = arith.constant 0 : index
    %46 = vector.load %arg11[%c0_27, %c0_28] : memref<1x128xf32, #tpu.memory_space<vmem>>, vector<1x128xf32>
    %47 = vector.broadcast %46 : vector<1x128xf32> to vector<2x128xf32>
    %48 = arith.addf %45, %47 : vector<2x128xf32>
    %c0_29 = arith.constant 0 : index
    %c0_30 = arith.constant 0 : index
    %49 = vector.load %arg12[%c0_29, %c0_30] : memref<2x128xf32, #tpu.memory_space<vmem>>, vector<2x128xf32>
    tpu.vector_store %arg12[%c0_29, %c0_30], %48 {strides = array<i32>} : memref<2x128xf32, #tpu.memory_space<vmem>>, vector<2x128xf32>,
    return
  }
  func.func @transform_0(%arg0: i32) -> (i32, i32) {
    %c0_i32 = arith.constant 0 : i32
    %c0_i32_0 = arith.constant 0 : i32
    return %arg0, %c0_i32 : i32, i32
  }
  func.func @transform_1(%arg0: i32) -> (i32, i32) {
    %c0_i32 = arith.constant 0 : i32
    %c0_i32_0 = arith.constant 0 : i32
    return %arg0, %c0_i32 : i32, i32
  }
  func.func @transform_2(%arg0: i32) -> (i32, i32) {
    %c0_i32 = arith.constant 0 : i32
    %c0_i32_0 = arith.constant 0 : i32
    %c0_i32_1 = arith.constant 0 : i32
    return %c0_i32, %c0_i32_0 : i32, i32
  }
  func.func @transform_3(%arg0: i32) -> (i32, i32) {
    %c0_i32 = arith.constant 0 : i32
    %c0_i32_0 = arith.constant 0 : i32
    %c0_i32_1 = arith.constant 0 : i32
    return %c0_i32, %c0_i32_0 : i32, i32
  }
  func.func @transform_4(%arg0: i32) -> (i32, i32) {
    %c0_i32 = arith.constant 0 : i32
    %c0_i32_0 = arith.constant 0 : i32
    %c0_i32_1 = arith.constant 0 : i32
    return %c0_i32, %c0_i32_0 : i32, i32
  }
  func.func @transform_5(%arg0: i32) -> (i32, i32) {
    %c0_i32 = arith.constant 0 : i32
    %c0_i32_0 = arith.constant 0 : i32
    %c0_i32_1 = arith.constant 0 : i32
    return %c0_i32, %c0_i32_0 : i32, i32
  }
  func.func @transform_6(%arg0: i32) -> (i32, i32) {
    %c0_i32 = arith.constant 0 : i32
    %c0_i32_0 = arith.constant 0 : i32
    %c0_i32_1 = arith.constant 0 : i32
    return %c0_i32, %c0_i32_0 : i32, i32
  }
  func.func @transform_7(%arg0: i32) -> (i32, i32) {
    %c0_i32 = arith.constant 0 : i32
    %c0_i32_0 = arith.constant 0 : i32
    %c0_i32_1 = arith.constant 0 : i32
    return %c0_i32, %c0_i32_0 : i32, i32
  }
  func.func @transform_8(%arg0: i32) -> (i32, i32) {
    %c0_i32 = arith.constant 0 : i32
    %c0_i32_0 = arith.constant 0 : i32
    %c0_i32_1 = arith.constant 0 : i32
    return %c0_i32, %c0_i32_0 : i32, i32
  }
  func.func @transform_9(%arg0: i32) -> (i32, i32) {
    %c0_i32 = arith.constant 0 : i32
    %c0_i32_0 = arith.constant 0 : i32
    %c0_i32_1 = arith.constant 0 : i32
    return %c0_i32, %c0_i32_0 : i32, i32
  }
  func.func @transform_10(%arg0: i32) -> (i32, i32) {
    %c0_i32 = arith.constant 0 : i32
    %c0_i32_0 = arith.constant 0 : i32
    %c0_i32_1 = arith.constant 0 : i32
    return %c0_i32, %c0_i32_0 : i32, i32
  }
  func.func @transform_11(%arg0: i32) -> (i32, i32) {
    %c0_i32 = arith.constant 0 : i32
    %c0_i32_0 = arith.constant 0 : i32
    return %arg0, %c0_i32 : i32, i32
  }
}

</mosaic_0001>

<llo_original>
// kernel: dueling_dqn_forward.1
$region0: #{dueling_dqn_forward.1}
  #allocation0 [shape = 'u32[]', space=smem, size = 0x4, offset = 0x4, fixed_abs, tag = 'smem constant byte address 0x4 - core index']
  #allocation1 [shape = 'u32[144,128]{1,0:T(1,128)}', space=vmem, size = 0x12000, scoped, tag = 'internal scratch']
  %s0 = inlined_call_operand.vmem [shape: bf16[2,1024], index: 0, kind: input, shape index: {}]
  %s1 = inlined_call_operand.vmem [shape: f32[2,3], index: 1, kind: input, shape index: {}]
  %s2 = inlined_call_operand.vmem [shape: bf16[1024,256], index: 2, kind: input, shape index: {}]
  %s3 = inlined_call_operand.vmem [shape: f32[1,256], index: 3, kind: input, shape index: {}]
  %s4 = inlined_call_operand.vmem [shape: bf16[256,512], index: 4, kind: input, shape index: {}]
  %s5 = inlined_call_operand.vmem [shape: f32[1,512], index: 5, kind: input, shape index: {}]
  %s6 = inlined_call_operand.vmem [shape: bf16[512,256], index: 6, kind: input, shape index: {}]
  %s7 = inlined_call_operand.vmem [shape: f32[3,256], index: 7, kind: input, shape index: {}]
  %s8 = inlined_call_operand.vmem [shape: f32[1,256], index: 8, kind: input, shape index: {}]
  %s9 = inlined_call_operand.vmem [shape: bf16[256,128], index: 9, kind: input, shape index: {}]
  %s10 = inlined_call_operand.vmem [shape: f32[1,128], index: 10, kind: input, shape index: {}]
  %s11 = inlined_call_operand.vmem [shape: f32[2,128], index: 11, kind: output, shape index: {}]
  %s12 = sld [smem:[#allocation0]]
  $region54: #{dueling_dqn_forward.1} parent=0
    _
  %s14 = ssub.s32 1, %s12
  %s15 = scalar_select 0, %s14, %s12
  // Predicated region
  $region2: #{dueling_dqn_forward.1} parent=0 // pred_check
    _
  $region3: #{dueling_dqn_forward.1} parent=0 // pred_check_branch
    %17 = sbr.rel (0) target = $region5
  $region4: #{dueling_dqn_forward.1} parent=0 // pred_region
    _
  $region5: #{dueling_dqn_forward.1} parent=0 // pred_fallthru
    _
  // Predicated region
  $region6: #{dueling_dqn_forward.1} parent=0 // pred_check
    _
  $region7: #{dueling_dqn_forward.1} parent=0 // pred_check_branch
    %19 = sbr.rel (0) target = $region9
  $region8: #{dueling_dqn_forward.1} parent=0 // pred_region
    _
  $region9: #{dueling_dqn_forward.1} parent=0 // pred_fallthru
    _
  // Predicated region
  $region10: #{dueling_dqn_forward.1} parent=0 // pred_check
    _
  $region11: #{dueling_dqn_forward.1} parent=0 // pred_check_branch
    %21 = sbr.rel (0) target = $region13
  $region12: #{dueling_dqn_forward.1} parent=0 // pred_region
    _
  $region13: #{dueling_dqn_forward.1} parent=0 // pred_fallthru
    _
  // Predicated region
  $region14: #{dueling_dqn_forward.1} parent=0 // pred_check
    _
  $region15: #{dueling_dqn_forward.1} parent=0 // pred_check_branch
    %23 = sbr.rel (0) target = $region17
  $region16: #{dueling_dqn_forward.1} parent=0 // pred_region
    _
  $region17: #{dueling_dqn_forward.1} parent=0 // pred_fallthru
    _
  // Predicated region
  $region18: #{dueling_dqn_forward.1} parent=0 // pred_check
    _
  $region19: #{dueling_dqn_forward.1} parent=0 // pred_check_branch
    %25 = sbr.rel (0) target = $region21
  $region20: #{dueling_dqn_forward.1} parent=0 // pred_region
    _
  $region21: #{dueling_dqn_forward.1} parent=0 // pred_fallthru
    _
  // Predicated region
  $region22: #{dueling_dqn_forward.1} parent=0 // pred_check
    _
  $region23: #{dueling_dqn_forward.1} parent=0 // pred_check_branch
    %27 = sbr.rel (0) target = $region25
  $region24: #{dueling_dqn_forward.1} parent=0 // pred_region
    _
  $region25: #{dueling_dqn_forward.1} parent=0 // pred_fallthru
    _
  // Predicated region
  $region26: #{dueling_dqn_forward.1} parent=0 // pred_check
    _
  $region27: #{dueling_dqn_forward.1} parent=0 // pred_check_branch
    %29 = sbr.rel (0) target = $region29
  $region28: #{dueling_dqn_forward.1} parent=0 // pred_region
    _
  $region29: #{dueling_dqn_forward.1} parent=0 // pred_fallthru
    _
  // Predicated region
  $region30: #{dueling_dqn_forward.1} parent=0 // pred_check
    _
  $region31: #{dueling_dqn_forward.1} parent=0 // pred_check_branch
    %31 = sbr.rel (0) target = $region33
  $region32: #{dueling_dqn_forward.1} parent=0 // pred_region
    _
  $region33: #{dueling_dqn_forward.1} parent=0 // pred_fallthru
    _
  // Predicated region
  $region34: #{dueling_dqn_forward.1} parent=0 // pred_check
    _
  $region35: #{dueling_dqn_forward.1} parent=0 // pred_check_branch
    %33 = sbr.rel (0) target = $region37
  $region36: #{dueling_dqn_forward.1} parent=0 // pred_region
    _
  $region37: #{dueling_dqn_forward.1} parent=0 // pred_fallthru
    _
  // Predicated region
  $region38: #{dueling_dqn_forward.1} parent=0 // pred_check
    _
  $region39: #{dueling_dqn_forward.1} parent=0 // pred_check_branch
    %35 = sbr.rel (0) target = $region41
  $region40: #{dueling_dqn_forward.1} parent=0 // pred_region
    _
  $region41: #{dueling_dqn_forward.1} parent=0 // pred_fallthru
    _
  // Predicated region
  $region42: #{dueling_dqn_forward.1} parent=0 // pred_check
    _
  $region43: #{dueling_dqn_forward.1} parent=0 // pred_check_branch
    %37 = sbr.rel (0) target = $region45
  $region44: #{dueling_dqn_forward.1} parent=0 // pred_region
    _
  $region45: #{dueling_dqn_forward.1} parent=0 // pred_fallthru
    _
  %v39 = vld [vmem:[%s0] sm:$0xff]
  %v40 = vld [vmem:[%s2] sm:$0xff]
  %v41 = vld [vmem:[%s2 + $0x8] sm:$0xff]
  %v42 = vld [vmem:[%s2 + $0x10] sm:$0xff]
  %v43 = vld [vmem:[%s2 + $0x18] sm:$0xff]
  %v44 = vld [vmem:[%s2 + $0x20] sm:$0xff]
  %v45 = vld [vmem:[%s2 + $0x28] sm:$0xff]
  %v46 = vld [vmem:[%s2 + $0x30] sm:$0xff]
  %v47 = vld [vmem:[%s2 + $0x38] sm:$0xff]
  %v48 = vld [vmem:[%s2 + $0x40] sm:$0xff]
  %v49 = vld [vmem:[%s2 + $0x48] sm:$0xff]
  %v50 = vld [vmem:[%s2 + $0x50] sm:$0xff]
  %v51 = vld [vmem:[%s2 + $0x58] sm:$0xff]
  %v52 = vld [vmem:[%s2 + $0x60] sm:$0xff]
  %v53 = vld [vmem:[%s2 + $0x68] sm:$0xff]
  %v54 = vld [vmem:[%s2 + $0x70] sm:$0xff]
  %v55 = vld [vmem:[%s2 + $0x78] sm:$0xff]
  %v56 = vld [vmem:[%s2 + $0x80] sm:$0xff]
  %v57 = vld [vmem:[%s2 + $0x88] sm:$0xff]
  %v58 = vld [vmem:[%s2 + $0x90] sm:$0xff]
  %v59 = vld [vmem:[%s2 + $0x98] sm:$0xff]
  %v60 = vld [vmem:[%s2 + $0xa0] sm:$0xff]
  %v61 = vld [vmem:[%s2 + $0xa8] sm:$0xff]
  %v62 = vld [vmem:[%s2 + $0xb0] sm:$0xff]
  %v63 = vld [vmem:[%s2 + $0xb8] sm:$0xff]
  %v64 = vld [vmem:[%s2 + $0xc0] sm:$0xff]
  %v65 = vld [vmem:[%s2 + $0xc8] sm:$0xff]
  %v66 = vld [vmem:[%s2 + $0xd0] sm:$0xff]
  %v67 = vld [vmem:[%s2 + $0xd8] sm:$0xff]
  %v68 = vld [vmem:[%s2 + $0xe0] sm:$0xff]
  %v69 = vld [vmem:[%s2 + $0xe8] sm:$0xff]
  %v70 = vld [vmem:[%s2 + $0xf0] sm:$0xff]
  %v71 = vld [vmem:[%s2 + $0xf8] sm:$0xff]
  %v72 = vld [vmem:[%s2 + $0x100] sm:$0xff]
  %v73 = vld [vmem:[%s2 + $0x108] sm:$0xff]
  %v74 = vld [vmem:[%s2 + $0x110] sm:$0xff]
  %v75 = vld [vmem:[%s2 + $0x118] sm:$0xff]
  %v76 = vld [vmem:[%s2 + $0x120] sm:$0xff]
  %v77 = vld [vmem:[%s2 + $0x128] sm:$0xff]
  %v78 = vld [vmem:[%s2 + $0x130] sm:$0xff]
  %v79 = vld [vmem:[%s2 + $0x138] sm:$0xff]
  %v80 = vld [vmem:[%s2 + $0x140] sm:$0xff]
  %v81 = vld [vmem:[%s2 + $0x148] sm:$0xff]
  %v82 = vld [vmem:[%s2 + $0x150] sm:$0xff]
  %v83 = vld [vmem:[%s2 + $0x158] sm:$0xff]
  %v84 = vld [vmem:[%s2 + $0x160] sm:$0xff]
  %v85 = vld [vmem:[%s2 + $0x168] sm:$0xff]
  %v86 = vld [vmem:[%s2 + $0x170] sm:$0xff]
  %v87 = vld [vmem:[%s2 + $0x178] sm:$0xff]
  %v88 = vld [vmem:[%s2 + $0x180] sm:$0xff]
  %v89 = vld [vmem:[%s2 + $0x188] sm:$0xff]
  %v90 = vld [vmem:[%s2 + $0x190] sm:$0xff]
  %v91 = vld [vmem:[%s2 + $0x198] sm:$0xff]
  %v92 = vld [vmem:[%s2 + $0x1a0] sm:$0xff]
  %v93 = vld [vmem:[%s2 + $0x1a8] sm:$0xff]
  %v94 = vld [vmem:[%s2 + $0x1b0] sm:$0xff]
  %v95 = vld [vmem:[%s2 + $0x1b8] sm:$0xff]
  %v96 = vld [vmem:[%s2 + $0x1c0] sm:$0xff]
  %v97 = vld [vmem:[%s2 + $0x1c8] sm:$0xff]
  %v98 = vld [vmem:[%s2 + $0x1d0] sm:$0xff]
  %v99 = vld [vmem:[%s2 + $0x1d8] sm:$0xff]
  %v100 = vld [vmem:[%s2 + $0x1e0] sm:$0xff]
  %v101 = vld [vmem:[%s2 + $0x1e8] sm:$0xff]
  %v102 = vld [vmem:[%s2 + $0x1f0] sm:$0xff]
  %v103 = vld [vmem:[%s2 + $0x1f8] sm:$0xff]
  %v104 = vld [vmem:[%s2 + $0x200] sm:$0xff]
  %v105 = vld [vmem:[%s2 + $0x208] sm:$0xff]
  %v106 = vld [vmem:[%s2 + $0x210] sm:$0xff]
  %v107 = vld [vmem:[%s2 + $0x218] sm:$0xff]
  %v108 = vld [vmem:[%s2 + $0x220] sm:$0xff]
  %v109 = vld [vmem:[%s2 + $0x228] sm:$0xff]
  %v110 = vld [vmem:[%s2 + $0x230] sm:$0xff]
  %v111 = vld [vmem:[%s2 + $0x238] sm:$0xff]
  %v112 = vld [vmem:[%s2 + $0x240] sm:$0xff]
  %v113 = vld [vmem:[%s2 + $0x248] sm:$0xff]
  %v114 = vld [vmem:[%s2 + $0x250] sm:$0xff]
  %v115 = vld [vmem:[%s2 + $0x258] sm:$0xff]
  %v116 = vld [vmem:[%s2 + $0x260] sm:$0xff]
  %v117 = vld [vmem:[%s2 + $0x268] sm:$0xff]
  %v118 = vld [vmem:[%s2 + $0x270] sm:$0xff]
  %v119 = vld [vmem:[%s2 + $0x278] sm:$0xff]
  %v120 = vld [vmem:[%s2 + $0x280] sm:$0xff]
  %v121 = vld [vmem:[%s2 + $0x288] sm:$0xff]
  %v122 = vld [vmem:[%s2 + $0x290] sm:$0xff]
  %v123 = vld [vmem:[%s2 + $0x298] sm:$0xff]
  %v124 = vld [vmem:[%s2 + $0x2a0] sm:$0xff]
  %v125 = vld [vmem:[%s2 + $0x2a8] sm:$0xff]
  %v126 = vld [vmem:[%s2 + $0x2b0] sm:$0xff]
  %v127 = vld [vmem:[%s2 + $0x2b8] sm:$0xff]
  %v128 = vld [vmem:[%s2 + $0x2c0] sm:$0xff]
  %v129 = vld [vmem:[%s2 + $0x2c8] sm:$0xff]
  %v130 = vld [vmem:[%s2 + $0x2d0] sm:$0xff]
  %v131 = vld [vmem:[%s2 + $0x2d8] sm:$0xff]
  %v132 = vld [vmem:[%s2 + $0x2e0] sm:$0xff]
  %v133 = vld [vmem:[%s2 + $0x2e8] sm:$0xff]
  %v134 = vld [vmem:[%s2 + $0x2f0] sm:$0xff]
  %v135 = vld [vmem:[%s2 + $0x2f8] sm:$0xff]
  %v136 = vld [vmem:[%s2 + $0x300] sm:$0xff]
  %v137 = vld [vmem:[%s2 + $0x308] sm:$0xff]
  %v138 = vld [vmem:[%s2 + $0x310] sm:$0xff]
  %v139 = vld [vmem:[%s2 + $0x318] sm:$0xff]
  %v140 = vld [vmem:[%s2 + $0x320] sm:$0xff]
  %v141 = vld [vmem:[%s2 + $0x328] sm:$0xff]
  %v142 = vld [vmem:[%s2 + $0x330] sm:$0xff]
  %v143 = vld [vmem:[%s2 + $0x338] sm:$0xff]
  %v144 = vld [vmem:[%s2 + $0x340] sm:$0xff]
  %v145 = vld [vmem:[%s2 + $0x348] sm:$0xff]
  %v146 = vld [vmem:[%s2 + $0x350] sm:$0xff]
  %v147 = vld [vmem:[%s2 + $0x358] sm:$0xff]
  %v148 = vld [vmem:[%s2 + $0x360] sm:$0xff]
  %v149 = vld [vmem:[%s2 + $0x368] sm:$0xff]
  %v150 = vld [vmem:[%s2 + $0x370] sm:$0xff]
  %v151 = vld [vmem:[%s2 + $0x378] sm:$0xff]
  %v152 = vld [vmem:[%s2 + $0x380] sm:$0xff]
  %v153 = vld [vmem:[%s2 + $0x388] sm:$0xff]
  %v154 = vld [vmem:[%s2 + $0x390] sm:$0xff]
  %v155 = vld [vmem:[%s2 + $0x398] sm:$0xff]
  %v156 = vld [vmem:[%s2 + $0x3a0] sm:$0xff]
  %v157 = vld [vmem:[%s2 + $0x3a8] sm:$0xff]
  %v158 = vld [vmem:[%s2 + $0x3b0] sm:$0xff]
  %v159 = vld [vmem:[%s2 + $0x3b8] sm:$0xff]
  %v160 = vld [vmem:[%s2 + $0x3c0] sm:$0xff]
  %v161 = vld [vmem:[%s2 + $0x3c8] sm:$0xff]
  %v162 = vld [vmem:[%s2 + $0x3d0] sm:$0xff]
  %v163 = vld [vmem:[%s2 + $0x3d8] sm:$0xff]
  %v164 = vld [vmem:[%s2 + $0x3e0] sm:$0xff]
  %v165 = vld [vmem:[%s2 + $0x3e8] sm:$0xff]
  %v166 = vld [vmem:[%s2 + $0x3f0] sm:$0xff]
  %v167 = vld [vmem:[%s2 + $0x3f8] sm:$0xff]
  %v168 = vld [vmem:[%s3] sm:$0x3]
  %v170 = vlaneseq
  %v171 = vshrl.u32 %v170, 7
  %v172 = vsub.s32 0, %v171
  %v173 = vrot.slane %v168, %v172
  %v174 = vlaneseq
  %v175 = vshrl.u32 %v174, 7
  %v176 = vsub.s32 1, %v175
  %v177 = vrot.slane %v168, %v176
  %v181 = vcombine.high %v39, %v39
  %v183 = vunpack.c.l.s4 1966171168
  %v184 = vunpack.c.0.s8 %v183
  %v185 = vlaneseq
  %v186 = vshrl.u32 %v185, 7
  %v187 = vsub.s32 %v184, %v186
  %v188 = vrot.slane %v39, %v187
  %v190 = vunpack.c.l.s4 1966171168
  %v191 = vunpack.c.0.s8 %v190
  %v192 = vlaneseq
  %v193 = vshrl.u32 %v192, 7
  %v194 = vsub.s32 %v191, %v193
  %v195 = vrot.slane %v181, %v194
  %v196 = vcombine.high %v188, %v188
  %v197 = vcombine.high %v195, %v195
  %v199 = vunpack.c.l.s4 1966171168
  %v200 = vunpack.c.0.s8 %v199
  %v201 = vlaneseq
  %v202 = vshrl.u32 %v201, 7
  %v203 = vsub.s32 %v200, %v202
  %v204 = vrot.slane %v188, %v203
  %v206 = vunpack.c.l.s4 1966171168
  %v207 = vunpack.c.0.s8 %v206
  %v208 = vlaneseq
  %v209 = vshrl.u32 %v208, 7
  %v210 = vsub.s32 %v207, %v209
  %v211 = vrot.slane %v195, %v210
  %v213 = vunpack.c.l.s4 1966171168
  %v214 = vunpack.c.0.s8 %v213
  %v215 = vlaneseq
  %v216 = vshrl.u32 %v215, 7
  %v217 = vsub.s32 %v214, %v216
  %v218 = vrot.slane %v196, %v217
  %v220 = vunpack.c.l.s4 1966171168
  %v221 = vunpack.c.0.s8 %v220
  %v222 = vlaneseq
  %v223 = vshrl.u32 %v222, 7
  %v224 = vsub.s32 %v221, %v223
  %v225 = vrot.slane %v197, %v224
  %v226 = vcombine.high %v204, %v204
  %v227 = vcombine.high %v211, %v211
  %v228 = vcombine.high %v218, %v218
  %v229 = vcombine.high %v225, %v225
  %v366 = vunpack.c.l.b16 %v40
  %v367 = vunpack.c.h.b16 %v40
  %v368 = vunpack.c.l.b16 %v41
  %v369 = vunpack.c.h.b16 %v41
  %v370 = vunpack.c.l.b16 %v42
  %v371 = vunpack.c.h.b16 %v42
  %v372 = vunpack.c.l.b16 %v43
  %v373 = vunpack.c.h.b16 %v43
  %v374 = vunpack.c.l.b16 %v44
  %v375 = vunpack.c.h.b16 %v44
  %v376 = vunpack.c.l.b16 %v45
  %v377 = vunpack.c.h.b16 %v45
  %v378 = vunpack.c.l.b16 %v46
  %v379 = vunpack.c.h.b16 %v46
  %v380 = vunpack.c.l.b16 %v47
  %v381 = vunpack.c.h.b16 %v47
  %v382 = vunpack.c.l.b16 %v48
  %v383 = vunpack.c.h.b16 %v48
  %v384 = vunpack.c.l.b16 %v49
  %v385 = vunpack.c.h.b16 %v49
  %v386 = vunpack.c.l.b16 %v50
  %v387 = vunpack.c.h.b16 %v50
  %v388 = vunpack.c.l.b16 %v51
  %v389 = vunpack.c.h.b16 %v51
  %v390 = vunpack.c.l.b16 %v52
  %v391 = vunpack.c.h.b16 %v52
  %v392 = vunpack.c.l.b16 %v53
  %v393 = vunpack.c.h.b16 %v53
  %v394 = vunpack.c.l.b16 %v54
  %v395 = vunpack.c.h.b16 %v54
  %v396 = vunpack.c.l.b16 %v55
  %v397 = vunpack.c.h.b16 %v55
  %v398 = vunpack.c.l.b16 %v56
  %v399 = vunpack.c.h.b16 %v56
  %v400 = vunpack.c.l.b16 %v57
  %v401 = vunpack.c.h.b16 %v57
  %v402 = vunpack.c.l.b16 %v58
  %v403 = vunpack.c.h.b16 %v58
  %v404 = vunpack.c.l.b16 %v59
  %v405 = vunpack.c.h.b16 %v59
  %v406 = vunpack.c.l.b16 %v60
  %v407 = vunpack.c.h.b16 %v60
  %v408 = vunpack.c.l.b16 %v61
  %v409 = vunpack.c.h.b16 %v61
  %v410 = vunpack.c.l.b16 %v62
  %v411 = vunpack.c.h.b16 %v62
  %v412 = vunpack.c.l.b16 %v63
  %v413 = vunpack.c.h.b16 %v63
  %v414 = vunpack.c.l.b16 %v64
  %v415 = vunpack.c.h.b16 %v64
  %v416 = vunpack.c.l.b16 %v65
  %v417 = vunpack.c.h.b16 %v65
  %v418 = vunpack.c.l.b16 %v66
  %v419 = vunpack.c.h.b16 %v66
  %v420 = vunpack.c.l.b16 %v67
  %v421 = vunpack.c.h.b16 %v67
  %v422 = vunpack.c.l.b16 %v68
  %v423 = vunpack.c.h.b16 %v68
  %v424 = vunpack.c.l.b16 %v69
  %v425 = vunpack.c.h.b16 %v69
  %v426 = vunpack.c.l.b16 %v70
  %v427 = vunpack.c.h.b16 %v70
  %v428 = vunpack.c.l.b16 %v71
  %v429 = vunpack.c.h.b16 %v71
  %v430 = vunpack.c.l.b16 %v72
  %v431 = vunpack.c.h.b16 %v72
  %v432 = vunpack.c.l.b16 %v73
  %v433 = vunpack.c.h.b16 %v73
  %v434 = vunpack.c.l.b16 %v74
  %v435 = vunpack.c.h.b16 %v74
  %v436 = vunpack.c.l.b16 %v75
  %v437 = vunpack.c.h.b16 %v75
  %v438 = vunpack.c.l.b16 %v76
  %v439 = vunpack.c.h.b16 %v76
  %v440 = vunpack.c.l.b16 %v77
  %v441 = vunpack.c.h.b16 %v77
  %v442 = vunpack.c.l.b16 %v78
  %v443 = vunpack.c.h.b16 %v78
  %v444 = vunpack.c.l.b16 %v79
  %v445 = vunpack.c.h.b16 %v79
  %v446 = vunpack.c.l.b16 %v80
  %v447 = vunpack.c.h.b16 %v80
  %v448 = vunpack.c.l.b16 %v81
  %v449 = vunpack.c.h.b16 %v81
  %v450 = vunpack.c.l.b16 %v82
  %v451 = vunpack.c.h.b16 %v82
  %v452 = vunpack.c.l.b16 %v83
  %v453 = vunpack.c.h.b16 %v83
  %v454 = vunpack.c.l.b16 %v84
  %v455 = vunpack.c.h.b16 %v84
  %v456 = vunpack.c.l.b16 %v85
  %v457 = vunpack.c.h.b16 %v85
  %v458 = vunpack.c.l.b16 %v86
  %v459 = vunpack.c.h.b16 %v86
  %v460 = vunpack.c.l.b16 %v87
  %v461 = vunpack.c.h.b16 %v87
  %v462 = vunpack.c.l.b16 %v88
  %v463 = vunpack.c.h.b16 %v88
  %v464 = vunpack.c.l.b16 %v89
  %v465 = vunpack.c.h.b16 %v89
  %v466 = vunpack.c.l.b16 %v90
  %v467 = vunpack.c.h.b16 %v90
  %v468 = vunpack.c.l.b16 %v91
  %v469 = vunpack.c.h.b16 %v91
  %v470 = vunpack.c.l.b16 %v92
  %v471 = vunpack.c.h.b16 %v92
  %v472 = vunpack.c.l.b16 %v93
  %v473 = vunpack.c.h.b16 %v93
  %v474 = vunpack.c.l.b16 %v94
  %v475 = vunpack.c.h.b16 %v94
  %v476 = vunpack.c.l.b16 %v95
  %v477 = vunpack.c.h.b16 %v95
  %v478 = vunpack.c.l.b16 %v96
  %v479 = vunpack.c.h.b16 %v96
  %v480 = vunpack.c.l.b16 %v97
  %v481 = vunpack.c.h.b16 %v97
  %v482 = vunpack.c.l.b16 %v98
  %v483 = vunpack.c.h.b16 %v98
  %v484 = vunpack.c.l.b16 %v99
  %v485 = vunpack.c.h.b16 %v99
  %v486 = vunpack.c.l.b16 %v100
  %v487 = vunpack.c.h.b16 %v100
  %v488 = vunpack.c.l.b16 %v101
  %v489 = vunpack.c.h.b16 %v101
  %v490 = vunpack.c.l.b16 %v102
  %v491 = vunpack.c.h.b16 %v102
  %v492 = vunpack.c.l.b16 %v103
  %v493 = vunpack.c.h.b16 %v103
  %v494 = vunpack.c.l.b16 %v104
  %v495 = vunpack.c.h.b16 %v104
  %v496 = vunpack.c.l.b16 %v105
  %v497 = vunpack.c.h.b16 %v105
  %v498 = vunpack.c.l.b16 %v106
  %v499 = vunpack.c.h.b16 %v106
  %v500 = vunpack.c.l.b16 %v107
  %v501 = vunpack.c.h.b16 %v107
  %v502 = vunpack.c.l.b16 %v108
  %v503 = vunpack.c.h.b16 %v108
  %v504 = vunpack.c.l.b16 %v109
  %v505 = vunpack.c.h.b16 %v109
  %v506 = vunpack.c.l.b16 %v110
  %v507 = vunpack.c.h.b16 %v110
  %v508 = vunpack.c.l.b16 %v111
  %v509 = vunpack.c.h.b16 %v111
  %v510 = vunpack.c.l.b16 %v112
  %v511 = vunpack.c.h.b16 %v112
  %v512 = vunpack.c.l.b16 %v113
  %v513 = vunpack.c.h.b16 %v113
  %v514 = vunpack.c.l.b16 %v114
  %v515 = vunpack.c.h.b16 %v114
  %v516 = vunpack.c.l.b16 %v115
  %v517 = vunpack.c.h.b16 %v115
  %v518 = vunpack.c.l.b16 %v116
  %v519 = vunpack.c.h.b16 %v116
  %v520 = vunpack.c.l.b16 %v117
  %v521 = vunpack.c.h.b16 %v117
  %v522 = vunpack.c.l.b16 %v118
  %v523 = vunpack.c.h.b16 %v118
  %v524 = vunpack.c.l.b16 %v119
  %v525 = vunpack.c.h.b16 %v119
  %v526 = vunpack.c.l.b16 %v120
  %v527 = vunpack.c.h.b16 %v120
  %v528 = vunpack.c.l.b16 %v121
  %v529 = vunpack.c.h.b16 %v121
  %v530 = vunpack.c.l.b16 %v122
  %v531 = vunpack.c.h.b16 %v122
  %v532 = vunpack.c.l.b16 %v123
  %v533 = vunpack.c.h.b16 %v123
  %v534 = vunpack.c.l.b16 %v124
  %v535 = vunpack.c.h.b16 %v124
  %v536 = vunpack.c.l.b16 %v125
  %v537 = vunpack.c.h.b16 %v125
  %v538 = vunpack.c.l.b16 %v126
  %v539 = vunpack.c.h.b16 %v126
  %v540 = vunpack.c.l.b16 %v127
  %v541 = vunpack.c.h.b16 %v127
  %v542 = vunpack.c.l.b16 %v128
  %v543 = vunpack.c.h.b16 %v128
  %v544 = vunpack.c.l.b16 %v129
  %v545 = vunpack.c.h.b16 %v129
  %v546 = vunpack.c.l.b16 %v130
  %v547 = vunpack.c.h.b16 %v130
  %v548 = vunpack.c.l.b16 %v131
  %v549 = vunpack.c.h.b16 %v131
  %v550 = vunpack.c.l.b16 %v132
  %v551 = vunpack.c.h.b16 %v132
  %v552 = vunpack.c.l.b16 %v133
  %v553 = vunpack.c.h.b16 %v133
  %v554 = vunpack.c.l.b16 %v134
  %v555 = vunpack.c.h.b16 %v134
  %v556 = vunpack.c.l.b16 %v135
  %v557 = vunpack.c.h.b16 %v135
  %v558 = vunpack.c.l.b16 %v136
  %v559 = vunpack.c.h.b16 %v136
  %v560 = vunpack.c.l.b16 %v137
  %v561 = vunpack.c.h.b16 %v137
  %v562 = vunpack.c.l.b16 %v138
  %v563 = vunpack.c.h.b16 %v138
  %v564 = vunpack.c.l.b16 %v139
  %v565 = vunpack.c.h.b16 %v139
  %v566 = vunpack.c.l.b16 %v140
  %v567 = vunpack.c.h.b16 %v140
  %v568 = vunpack.c.l.b16 %v141
  %v569 = vunpack.c.h.b16 %v141
  %v570 = vunpack.c.l.b16 %v142
  %v571 = vunpack.c.h.b16 %v142
  %v572 = vunpack.c.l.b16 %v143
  %v573 = vunpack.c.h.b16 %v143
  %v574 = vunpack.c.l.b16 %v144
  %v575 = vunpack.c.h.b16 %v144
  %v576 = vunpack.c.l.b16 %v145
  %v577 = vunpack.c.h.b16 %v145
  %v578 = vunpack.c.l.b16 %v146
  %v579 = vunpack.c.h.b16 %v146
  %v580 = vunpack.c.l.b16 %v147
  %v581 = vunpack.c.h.b16 %v147
  %v582 = vunpack.c.l.b16 %v148
  %v583 = vunpack.c.h.b16 %v148
  %v584 = vunpack.c.l.b16 %v149
  %v585 = vunpack.c.h.b16 %v149
  %v586 = vunpack.c.l.b16 %v150
  %v587 = vunpack.c.h.b16 %v150
  %v588 = vunpack.c.l.b16 %v151
  %v589 = vunpack.c.h.b16 %v151
  %v590 = vunpack.c.l.b16 %v152
  %v591 = vunpack.c.h.b16 %v152
  %v592 = vunpack.c.l.b16 %v153
  %v593 = vunpack.c.h.b16 %v153
  %v594 = vunpack.c.l.b16 %v154
  %v595 = vunpack.c.h.b16 %v154
  %v596 = vunpack.c.l.b16 %v155
  %v597 = vunpack.c.h.b16 %v155
  %v598 = vunpack.c.l.b16 %v156
  %v599 = vunpack.c.h.b16 %v156
  %v600 = vunpack.c.l.b16 %v157
  %v601 = vunpack.c.h.b16 %v157
  %v602 = vunpack.c.l.b16 %v158
  %v603 = vunpack.c.h.b16 %v158
  %v604 = vunpack.c.l.b16 %v159
  %v605 = vunpack.c.h.b16 %v159
  %v606 = vunpack.c.l.b16 %v160
  %v607 = vunpack.c.h.b16 %v160
  %v608 = vunpack.c.l.b16 %v161
  %v609 = vunpack.c.h.b16 %v161
  %v610 = vunpack.c.l.b16 %v162
  %v611 = vunpack.c.h.b16 %v162
  %v612 = vunpack.c.l.b16 %v163
  %v613 = vunpack.c.h.b16 %v163
  %v614 = vunpack.c.l.b16 %v164
  %v615 = vunpack.c.h.b16 %v164
  %v616 = vunpack.c.l.b16 %v165
  %v617 = vunpack.c.h.b16 %v165
  %v618 = vunpack.c.l.b16 %v166
  %v619 = vunpack.c.h.b16 %v166
  %v620 = vunpack.c.l.b16 %v167
  %v621 = vunpack.c.h.b16 %v167
  %v622 = vpack.c.b16 %v368, %v366
  %v623 = vpack.c.b16 %v369, %v367
  %v624 = vpack.c.b16 %v372, %v370
  %v625 = vpack.c.b16 %v373, %v371
  %v626 = vpack.c.b16 %v376, %v374
  %v627 = vpack.c.b16 %v377, %v375
  %v628 = vpack.c.b16 %v380, %v378
  %v629 = vpack.c.b16 %v381, %v379
  %v630 = vpack.c.b16 %v384, %v382
  %v631 = vpack.c.b16 %v385, %v383
  %v632 = vpack.c.b16 %v388, %v386
  %v633 = vpack.c.b16 %v389, %v387
  %v634 = vpack.c.b16 %v392, %v390
  %v635 = vpack.c.b16 %v393, %v391
  %v636 = vpack.c.b16 %v396, %v394
  %v637 = vpack.c.b16 %v397, %v395
  %v638 = vpack.c.b16 %v400, %v398
  %v639 = vpack.c.b16 %v401, %v399
  %v640 = vpack.c.b16 %v404, %v402
  %v641 = vpack.c.b16 %v405, %v403
  %v642 = vpack.c.b16 %v408, %v406
  %v643 = vpack.c.b16 %v409, %v407
  %v644 = vpack.c.b16 %v412, %v410
  %v645 = vpack.c.b16 %v413, %v411
  %v646 = vpack.c.b16 %v416, %v414
  %v647 = vpack.c.b16 %v417, %v415
  %v648 = vpack.c.b16 %v420, %v418
  %v649 = vpack.c.b16 %v421, %v419
  %v650 = vpack.c.b16 %v424, %v422
  %v651 = vpack.c.b16 %v425, %v423
  %v652 = vpack.c.b16 %v428, %v426
  %v653 = vpack.c.b16 %v429, %v427
  %v654 = vpack.c.b16 %v432, %v430
  %v655 = vpack.c.b16 %v433, %v431
  %v656 = vpack.c.b16 %v436, %v434
  %v657 = vpack.c.b16 %v437, %v435
  %v658 = vpack.c.b16 %v440, %v438
  %v659 = vpack.c.b16 %v441, %v439
  %v660 = vpack.c.b16 %v444, %v442
  %v661 = vpack.c.b16 %v445, %v443
  %v662 = vpack.c.b16 %v448, %v446
  %v663 = vpack.c.b16 %v449, %v447
  %v664 = vpack.c.b16 %v452, %v450
  %v665 = vpack.c.b16 %v453, %v451
  %v666 = vpack.c.b16 %v456, %v454
  %v667 = vpack.c.b16 %v457, %v455
  %v668 = vpack.c.b16 %v460, %v458
  %v669 = vpack.c.b16 %v461, %v459
  %v670 = vpack.c.b16 %v464, %v462
  %v671 = vpack.c.b16 %v465, %v463
  %v672 = vpack.c.b16 %v468, %v466
  %v673 = vpack.c.b16 %v469, %v467
  %v674 = vpack.c.b16 %v472, %v470
  %v675 = vpack.c.b16 %v473, %v471
  %v676 = vpack.c.b16 %v476, %v474
  %v677 = vpack.c.b16 %v477, %v475
  %v678 = vpack.c.b16 %v480, %v478
  %v679 = vpack.c.b16 %v481, %v479
  %v680 = vpack.c.b16 %v484, %v482
  %v681 = vpack.c.b16 %v485, %v483
  %v682 = vpack.c.b16 %v488, %v486
  %v683 = vpack.c.b16 %v489, %v487
  %v684 = vpack.c.b16 %v492, %v490
  %v685 = vpack.c.b16 %v493, %v491
  %v686 = vpack.c.b16 %v496, %v494
  %v687 = vpack.c.b16 %v497, %v495
  %v688 = vpack.c.b16 %v500, %v498
  %v689 = vpack.c.b16 %v501, %v499
  %v690 = vpack.c.b16 %v504, %v502
  %v691 = vpack.c.b16 %v505, %v503
  %v692 = vpack.c.b16 %v508, %v506
  %v693 = vpack.c.b16 %v509, %v507
  %v694 = vpack.c.b16 %v512, %v510
  %v695 = vpack.c.b16 %v513, %v511
  %v696 = vpack.c.b16 %v516, %v514
  %v697 = vpack.c.b16 %v517, %v515
  %v698 = vpack.c.b16 %v520, %v518
  %v699 = vpack.c.b16 %v521, %v519
  %v700 = vpack.c.b16 %v524, %v522
  %v701 = vpack.c.b16 %v525, %v523
  %v702 = vpack.c.b16 %v528, %v526
  %v703 = vpack.c.b16 %v529, %v527
  %v704 = vpack.c.b16 %v532, %v530
  %v705 = vpack.c.b16 %v533, %v531
  %v706 = vpack.c.b16 %v536, %v534
  %v707 = vpack.c.b16 %v537, %v535
  %v708 = vpack.c.b16 %v540, %v538
  %v709 = vpack.c.b16 %v541, %v539
  %v710 = vpack.c.b16 %v544, %v542
  %v711 = vpack.c.b16 %v545, %v543
  %v712 = vpack.c.b16 %v548, %v546
  %v713 = vpack.c.b16 %v549, %v547
  %v714 = vpack.c.b16 %v552, %v550
  %v715 = vpack.c.b16 %v553, %v551
  %v716 = vpack.c.b16 %v556, %v554
  %v717 = vpack.c.b16 %v557, %v555
  %v718 = vpack.c.b16 %v560, %v558
  %v719 = vpack.c.b16 %v561, %v559
  %v720 = vpack.c.b16 %v564, %v562
  %v721 = vpack.c.b16 %v565, %v563
  %v722 = vpack.c.b16 %v568, %v566
  %v723 = vpack.c.b16 %v569, %v567
  %v724 = vpack.c.b16 %v572, %v570
  %v725 = vpack.c.b16 %v573, %v571
  %v726 = vpack.c.b16 %v576, %v574
  %v727 = vpack.c.b16 %v577, %v575
  %v728 = vpack.c.b16 %v580, %v578
  %v729 = vpack.c.b16 %v581, %v579
  %v730 = vpack.c.b16 %v584, %v582
  %v731 = vpack.c.b16 %v585, %v583
  %v732 = vpack.c.b16 %v588, %v586
  %v733 = vpack.c.b16 %v589, %v587
  %v734 = vpack.c.b16 %v592, %v590
  %v735 = vpack.c.b16 %v593, %v591
  %v736 = vpack.c.b16 %v596, %v594
  %v737 = vpack.c.b16 %v597, %v595
  %v738 = vpack.c.b16 %v600, %v598
  %v739 = vpack.c.b16 %v601, %v599
  %v740 = vpack.c.b16 %v604, %v602
  %v741 = vpack.c.b16 %v605, %v603
  %v742 = vpack.c.b16 %v608, %v606
  %v743 = vpack.c.b16 %v609, %v607
  %v744 = vpack.c.b16 %v612, %v610
  %v745 = vpack.c.b16 %v613, %v611
  %v746 = vpack.c.b16 %v616, %v614
  %v747 = vpack.c.b16 %v617, %v615
  %v748 = vpack.c.b16 %v620, %v618
  %v749 = vpack.c.b16 %v621, %v619
  %878 = vmatprep.subr.bf16.mxu0 %v623
  %879 = vmatpush1.bf16.msra.mxu0 %v622
  %880 = vmatprep.subr.bf16.mxu0 %v625
  %881 = vmatpush1.bf16.msra.mxu0 %v624
  %882 = vmatprep.subr.bf16.mxu0 %v627
  %883 = vmatpush1.bf16.msra.mxu0 %v626
  %884 = vmatprep.subr.bf16.mxu0 %v629
  %885 = vmatpush1.bf16.msra.mxu0 %v628
  %886 = vmatprep.subr.bf16.mxu0 %v631
  %887 = vmatpush1.bf16.msra.mxu0 %v630
  %888 = vmatprep.subr.bf16.mxu0 %v633
  %889 = vmatpush1.bf16.msra.mxu0 %v632
  %890 = vmatprep.subr.bf16.mxu0 %v635
  %891 = vmatpush1.bf16.msra.mxu0 %v634
  %892 = vmatprep.subr.bf16.mxu0 %v637
  %893 = vmatpush1.bf16.msra.mxu0 %v636
  %894 = vmatprep.subr.bf16.mxu0 %v639
  %895 = vmatpush1.bf16.msra.mxu0 %v638
  %896 = vmatprep.subr.bf16.mxu0 %v641
  %897 = vmatpush1.bf16.msra.mxu0 %v640
  %898 = vmatprep.subr.bf16.mxu0 %v643
  %899 = vmatpush1.bf16.msra.mxu0 %v642
  %900 = vmatprep.subr.bf16.mxu0 %v645
  %901 = vmatpush1.bf16.msra.mxu0 %v644
  %902 = vmatprep.subr.bf16.mxu0 %v647
  %903 = vmatpush1.bf16.msra.mxu0 %v646
  %904 = vmatprep.subr.bf16.mxu0 %v649
  %905 = vmatpush1.bf16.msra.mxu0 %v648
  %906 = vmatprep.subr.bf16.mxu0 %v651
  %907 = vmatpush1.bf16.msra.mxu0 %v650
  %908 = vmatprep.subr.bf16.mxu0 %v653
  %909 = vmatpush1.bf16.msra.mxu0 %v652
  %910 = vmatprep.mubr.bf16.mxu0 %v218
  %911 = vmatmul.mubr.bf16.gmra.mrb[0].mxu0 %v204
  %v912 = vpop.f32.mrb[0].mxu0
  %v913 = vadd.f32 %v173, %v912
  %v914 = vpop.f32.mrb[0].mxu0
  %v915 = vadd.f32 %v177, %v914
  %v916 = vpop.f32.mrb[0].mxu0
  %v917 = vpop.f32.mrb[0].mxu0
  %918 = vdwg.mxu0
  %919 = vmatprep.subr.bf16.mxu0 %v655
  %920 = vmatpush1.bf16.msra.mxu0 %v654
  %921 = vmatprep.subr.bf16.mxu0 %v657
  %922 = vmatpush1.bf16.msra.mxu0 %v656
  %923 = vmatprep.subr.bf16.mxu0 %v659
  %924 = vmatpush1.bf16.msra.mxu0 %v658
  %925 = vmatprep.subr.bf16.mxu0 %v661
  %926 = vmatpush1.bf16.msra.mxu0 %v660
  %927 = vmatprep.subr.bf16.mxu0 %v663
  %928 = vmatpush1.bf16.msra.mxu0 %v662
  %929 = vmatprep.subr.bf16.mxu0 %v665
  %930 = vmatpush1.bf16.msra.mxu0 %v664
  %931 = vmatprep.subr.bf16.mxu0 %v667
  %932 = vmatpush1.bf16.msra.mxu0 %v666
  %933 = vmatprep.subr.bf16.mxu0 %v669
  %934 = vmatpush1.bf16.msra.mxu0 %v668
  %935 = vmatprep.subr.bf16.mxu0 %v671
  %936 = vmatpush1.bf16.msra.mxu0 %v670
  %937 = vmatprep.subr.bf16.mxu0 %v673
  %938 = vmatpush1.bf16.msra.mxu0 %v672
  %939 = vmatprep.subr.bf16.mxu0 %v675
  %940 = vmatpush1.bf16.msra.mxu0 %v674
  %941 = vmatprep.subr.bf16.mxu0 %v677
  %942 = vmatpush1.bf16.msra.mxu0 %v676
  %943 = vmatprep.subr.bf16.mxu0 %v679
  %944 = vmatpush1.bf16.msra.mxu0 %v678
  %945 = vmatprep.subr.bf16.mxu0 %v681
  %946 = vmatpush1.bf16.msra.mxu0 %v680
  %947 = vmatprep.subr.bf16.mxu0 %v683
  %948 = vmatpush1.bf16.msra.mxu0 %v682
  %949 = vmatprep.subr.bf16.mxu0 %v685
  %950 = vmatpush1.bf16.msra.mxu0 %v684
  %951 = vmatprep.mubr.bf16.mxu0 %v228
  %952 = vmatmul.mubr.bf16.gmra.mrb[0].mxu0 %v226
  %v953 = vpop.f32.mrb[0].mxu0
  %v954 = vadd.f32 %v913, %v953
  %v955 = vpop.f32.mrb[0].mxu0
  %v956 = vadd.f32 %v915, %v955
  %v957 = vpop.f32.mrb[0].mxu0
  %v958 = vpop.f32.mrb[0].mxu0
  %959 = vdwg.mxu0
  %960 = vmatprep.subr.bf16.mxu0 %v687
  %961 = vmatpush1.bf16.msra.mxu0 %v686
  %962 = vmatprep.subr.bf16.mxu0 %v689
  %963 = vmatpush1.bf16.msra.mxu0 %v688
  %964 = vmatprep.subr.bf16.mxu0 %v691
  %965 = vmatpush1.bf16.msra.mxu0 %v690
  %966 = vmatprep.subr.bf16.mxu0 %v693
  %967 = vmatpush1.bf16.msra.mxu0 %v692
  %968 = vmatprep.subr.bf16.mxu0 %v695
  %969 = vmatpush1.bf16.msra.mxu0 %v694
  %970 = vmatprep.subr.bf16.mxu0 %v697
  %971 = vmatpush1.bf16.msra.mxu0 %v696
  %972 = vmatprep.subr.bf16.mxu0 %v699
  %973 = vmatpush1.bf16.msra.mxu0 %v698
  %974 = vmatprep.subr.bf16.mxu0 %v701
  %975 = vmatpush1.bf16.msra.mxu0 %v700
  %976 = vmatprep.subr.bf16.mxu0 %v703
  %977 = vmatpush1.bf16.msra.mxu0 %v702
  %978 = vmatprep.subr.bf16.mxu0 %v705
  %979 = vmatpush1.bf16.msra.mxu0 %v704
  %980 = vmatprep.subr.bf16.mxu0 %v707
  %981 = vmatpush1.bf16.msra.mxu0 %v706
  %982 = vmatprep.subr.bf16.mxu0 %v709
  %983 = vmatpush1.bf16.msra.mxu0 %v708
  %984 = vmatprep.subr.bf16.mxu0 %v711
  %985 = vmatpush1.bf16.msra.mxu0 %v710
  %986 = vmatprep.subr.bf16.mxu0 %v713
  %987 = vmatpush1.bf16.msra.mxu0 %v712
  %988 = vmatprep.subr.bf16.mxu0 %v715
  %989 = vmatpush1.bf16.msra.mxu0 %v714
  %990 = vmatprep.subr.bf16.mxu0 %v717
  %991 = vmatpush1.bf16.msra.mxu0 %v716
  %992 = vmatprep.mubr.bf16.mxu0 %v225
  %993 = vmatmul.mubr.bf16.gmra.mrb[0].mxu0 %v211
  %v994 = vpop.f32.mrb[0].mxu0
  %v995 = vadd.f32 %v954, %v994
  %v996 = vpop.f32.mrb[0].mxu0
  %v997 = vadd.f32 %v956, %v996
  %v998 = vpop.f32.mrb[0].mxu0
  %v999 = vpop.f32.mrb[0].mxu0
  %1000 = vdwg.mxu0
  %1001 = vmatprep.subr.bf16.mxu0 %v719
  %1002 = vmatpush1.bf16.msra.mxu0 %v718
  %1003 = vmatprep.subr.bf16.mxu0 %v721
  %1004 = vmatpush1.bf16.msra.mxu0 %v720
  %1005 = vmatprep.subr.bf16.mxu0 %v723
  %1006 = vmatpush1.bf16.msra.mxu0 %v722
  %1007 = vmatprep.subr.bf16.mxu0 %v725
  %1008 = vmatpush1.bf16.msra.mxu0 %v724
  %1009 = vmatprep.subr.bf16.mxu0 %v727
  %1010 = vmatpush1.bf16.msra.mxu0 %v726
  %1011 = vmatprep.subr.bf16.mxu0 %v729
  %1012 = vmatpush1.bf16.msra.mxu0 %v728
  %1013 = vmatprep.subr.bf16.mxu0 %v731
  %1014 = vmatpush1.bf16.msra.mxu0 %v730
  %1015 = vmatprep.subr.bf16.mxu0 %v733
  %1016 = vmatpush1.bf16.msra.mxu0 %v732
  %1017 = vmatprep.subr.bf16.mxu0 %v735
  %1018 = vmatpush1.bf16.msra.mxu0 %v734
  %1019 = vmatprep.subr.bf16.mxu0 %v737
  %1020 = vmatpush1.bf16.msra.mxu0 %v736
  %1021 = vmatprep.subr.bf16.mxu0 %v739
  %1022 = vmatpush1.bf16.msra.mxu0 %v738
  %1023 = vmatprep.subr.bf16.mxu0 %v741
  %1024 = vmatpush1.bf16.msra.mxu0 %v740
  %1025 = vmatprep.subr.bf16.mxu0 %v743
  %1026 = vmatpush1.bf16.msra.mxu0 %v742
  %1027 = vmatprep.subr.bf16.mxu0 %v745
  %1028 = vmatpush1.bf16.msra.mxu0 %v744
  %1029 = vmatprep.subr.bf16.mxu0 %v747
  %1030 = vmatpush1.bf16.msra.mxu0 %v746
  %1031 = vmatprep.subr.bf16.mxu0 %v749
  %1032 = vmatpush1.bf16.msra.mxu0 %v748
  %1033 = vmatprep.mubr.bf16.mxu0 %v229
  %1034 = vmatmul.mubr.bf16.gmra.mrb[0].mxu0 %v227
  %v1035 = vpop.f32.mrb[0].mxu0
  %v1036 = vadd.f32 %v995, %v1035
  %v1037 = vpop.f32.mrb[0].mxu0
  %v1038 = vadd.f32 %v997, %v1037
  %v1039 = vpop.f32.mrb[0].mxu0
  %v1040 = vpop.f32.mrb[0].mxu0
  %1041 = vdwg.mxu0
  %v1042 = vmax.f32 %v1036, 0.0
  %v1043 = vmax.f32 %v1038, 0.0
  %v1044 = vpack.c.bf16 %v1042, %v1042
  %v1045 = vpack.c.bf16 %v1043, %v1043
  %v1046 = vld [vmem:[%s4] sm:$0xff]
  %v1047 = vld [vmem:[%s4 + $0x8] sm:$0xff]
  %v1048 = vld [vmem:[%s4 + $0x10] sm:$0xff]
  %v1049 = vld [vmem:[%s4 + $0x18] sm:$0xff]
  %v1050 = vld [vmem:[%s4 + $0x20] sm:$0xff]
  %v1051 = vld [vmem:[%s4 + $0x28] sm:$0xff]
  %v1052 = vld [vmem:[%s4 + $0x30] sm:$0xff]
  %v1053 = vld [vmem:[%s4 + $0x38] sm:$0xff]
  %v1054 = vld [vmem:[%s4 + $0x40] sm:$0xff]
  %v1055 = vld [vmem:[%s4 + $0x48] sm:$0xff]
  %v1056 = vld [vmem:[%s4 + $0x50] sm:$0xff]
  %v1057 = vld [vmem:[%s4 + $0x58] sm:$0xff]
  %v1058 = vld [vmem:[%s4 + $0x60] sm:$0xff]
  %v1059 = vld [vmem:[%s4 + $0x68] sm:$0xff]
  %v1060 = vld [vmem:[%s4 + $0x70] sm:$0xff]
  %v1061 = vld [vmem:[%s4 + $0x78] sm:$0xff]
  %v1062 = vld [vmem:[%s4 + $0x80] sm:$0xff]
  %v1063 = vld [vmem:[%s4 + $0x88] sm:$0xff]
  %v1064 = vld [vmem:[%s4 + $0x90] sm:$0xff]
  %v1065 = vld [vmem:[%s4 + $0x98] sm:$0xff]
  %v1066 = vld [vmem:[%s4 + $0xa0] sm:$0xff]
  %v1067 = vld [vmem:[%s4 + $0xa8] sm:$0xff]
  %v1068 = vld [vmem:[%s4 + $0xb0] sm:$0xff]
  %v1069 = vld [vmem:[%s4 + $0xb8] sm:$0xff]
  %v1070 = vld [vmem:[%s4 + $0xc0] sm:$0xff]
  %v1071 = vld [vmem:[%s4 + $0xc8] sm:$0xff]
  %v1072 = vld [vmem:[%s4 + $0xd0] sm:$0xff]
  %v1073 = vld [vmem:[%s4 + $0xd8] sm:$0xff]
  %v1074 = vld [vmem:[%s4 + $0xe0] sm:$0xff]
  %v1075 = vld [vmem:[%s4 + $0xe8] sm:$0xff]
  %v1076 = vld [vmem:[%s4 + $0xf0] sm:$0xff]
  %v1077 = vld [vmem:[%s4 + $0xf8] sm:$0xff]
  %v1078 = vld [vmem:[%s4 + $0x100] sm:$0xff]
  %v1079 = vld [vmem:[%s4 + $0x108] sm:$0xff]
  %v1080 = vld [vmem:[%s4 + $0x110] sm:$0xff]
  %v1081 = vld [vmem:[%s4 + $0x118] sm:$0xff]
  %v1082 = vld [vmem:[%s4 + $0x120] sm:$0xff]
  %v1083 = vld [vmem:[%s4 + $0x128] sm:$0xff]
  %v1084 = vld [vmem:[%s4 + $0x130] sm:$0xff]
  %v1085 = vld [vmem:[%s4 + $0x138] sm:$0xff]
  %v1086 = vld [vmem:[%s4 + $0x140] sm:$0xff]
  %v1087 = vld [vmem:[%s4 + $0x148] sm:$0xff]
  %v1088 = vld [vmem:[%s4 + $0x150] sm:$0xff]
  %v1089 = vld [vmem:[%s4 + $0x158] sm:$0xff]
  %v1090 = vld [vmem:[%s4 + $0x160] sm:$0xff]
  %v1091 = vld [vmem:[%s4 + $0x168] sm:$0xff]
  %v1092 = vld [vmem:[%s4 + $0x170] sm:$0xff]
  %v1093 = vld [vmem:[%s4 + $0x178] sm:$0xff]
  %v1094 = vld [vmem:[%s4 + $0x180] sm:$0xff]
  %v1095 = vld [vmem:[%s4 + $0x188] sm:$0xff]
  %v1096 = vld [vmem:[%s4 + $0x190] sm:$0xff]
  %v1097 = vld [vmem:[%s4 + $0x198] sm:$0xff]
  %v1098 = vld [vmem:[%s4 + $0x1a0] sm:$0xff]
  %v1099 = vld [vmem:[%s4 + $0x1a8] sm:$0xff]
  %v1100 = vld [vmem:[%s4 + $0x1b0] sm:$0xff]
  %v1101 = vld [vmem:[%s4 + $0x1b8] sm:$0xff]
  %v1102 = vld [vmem:[%s4 + $0x1c0] sm:$0xff]
  %v1103 = vld [vmem:[%s4 + $0x1c8] sm:$0xff]
  %v1104 = vld [vmem:[%s4 + $0x1d0] sm:$0xff]
  %v1105 = vld [vmem:[%s4 + $0x1d8] sm:$0xff]
  %v1106 = vld [vmem:[%s4 + $0x1e0] sm:$0xff]
  %v1107 = vld [vmem:[%s4 + $0x1e8] sm:$0xff]
  %v1108 = vld [vmem:[%s4 + $0x1f0] sm:$0xff]
  %v1109 = vld [vmem:[%s4 + $0x1f8] sm:$0xff]
  %v1110 = vld [vmem:[%s5] sm:$0xf]
  %v1112 = vlaneseq
  %v1113 = vshrl.u32 %v1112, 7
  %v1114 = vsub.s32 0, %v1113
  %v1115 = vrot.slane %v1110, %v1114
  %v1116 = vlaneseq
  %v1117 = vshrl.u32 %v1116, 7
  %v1118 = vsub.s32 1, %v1117
  %v1119 = vrot.slane %v1110, %v1118
  %v1120 = vlaneseq
  %v1121 = vshrl.u32 %v1120, 7
  %v1122 = vsub.s32 2, %v1121
  %v1123 = vrot.slane %v1110, %v1122
  %v1124 = vlaneseq
  %v1125 = vshrl.u32 %v1124, 7
  %v1126 = vsub.s32 3, %v1125
  %v1127 = vrot.slane %v1110, %v1126
  %v1196 = vunpack.c.l.b16 %v1046
  %v1197 = vunpack.c.h.b16 %v1046
  %v1198 = vunpack.c.l.b16 %v1047
  %v1199 = vunpack.c.h.b16 %v1047
  %v1200 = vunpack.c.l.b16 %v1048
  %v1201 = vunpack.c.h.b16 %v1048
  %v1202 = vunpack.c.l.b16 %v1049
  %v1203 = vunpack.c.h.b16 %v1049
  %v1204 = vunpack.c.l.b16 %v1050
  %v1205 = vunpack.c.h.b16 %v1050
  %v1206 = vunpack.c.l.b16 %v1051
  %v1207 = vunpack.c.h.b16 %v1051
  %v1208 = vunpack.c.l.b16 %v1052
  %v1209 = vunpack.c.h.b16 %v1052
  %v1210 = vunpack.c.l.b16 %v1053
  %v1211 = vunpack.c.h.b16 %v1053
  %v1212 = vunpack.c.l.b16 %v1054
  %v1213 = vunpack.c.h.b16 %v1054
  %v1214 = vunpack.c.l.b16 %v1055
  %v1215 = vunpack.c.h.b16 %v1055
  %v1216 = vunpack.c.l.b16 %v1056
  %v1217 = vunpack.c.h.b16 %v1056
  %v1218 = vunpack.c.l.b16 %v1057
  %v1219 = vunpack.c.h.b16 %v1057
  %v1220 = vunpack.c.l.b16 %v1058
  %v1221 = vunpack.c.h.b16 %v1058
  %v1222 = vunpack.c.l.b16 %v1059
  %v1223 = vunpack.c.h.b16 %v1059
  %v1224 = vunpack.c.l.b16 %v1060
  %v1225 = vunpack.c.h.b16 %v1060
  %v1226 = vunpack.c.l.b16 %v1061
  %v1227 = vunpack.c.h.b16 %v1061
  %v1228 = vunpack.c.l.b16 %v1062
  %v1229 = vunpack.c.h.b16 %v1062
  %v1230 = vunpack.c.l.b16 %v1063
  %v1231 = vunpack.c.h.b16 %v1063
  %v1232 = vunpack.c.l.b16 %v1064
  %v1233 = vunpack.c.h.b16 %v1064
  %v1234 = vunpack.c.l.b16 %v1065
  %v1235 = vunpack.c.h.b16 %v1065
  %v1236 = vunpack.c.l.b16 %v1066
  %v1237 = vunpack.c.h.b16 %v1066
  %v1238 = vunpack.c.l.b16 %v1067
  %v1239 = vunpack.c.h.b16 %v1067
  %v1240 = vunpack.c.l.b16 %v1068
  %v1241 = vunpack.c.h.b16 %v1068
  %v1242 = vunpack.c.l.b16 %v1069
  %v1243 = vunpack.c.h.b16 %v1069
  %v1244 = vunpack.c.l.b16 %v1070
  %v1245 = vunpack.c.h.b16 %v1070
  %v1246 = vunpack.c.l.b16 %v1071
  %v1247 = vunpack.c.h.b16 %v1071
  %v1248 = vunpack.c.l.b16 %v1072
  %v1249 = vunpack.c.h.b16 %v1072
  %v1250 = vunpack.c.l.b16 %v1073
  %v1251 = vunpack.c.h.b16 %v1073
  %v1252 = vunpack.c.l.b16 %v1074
  %v1253 = vunpack.c.h.b16 %v1074
  %v1254 = vunpack.c.l.b16 %v1075
  %v1255 = vunpack.c.h.b16 %v1075
  %v1256 = vunpack.c.l.b16 %v1076
  %v1257 = vunpack.c.h.b16 %v1076
  %v1258 = vunpack.c.l.b16 %v1077
  %v1259 = vunpack.c.h.b16 %v1077
  %v1260 = vunpack.c.l.b16 %v1078
  %v1261 = vunpack.c.h.b16 %v1078
  %v1262 = vunpack.c.l.b16 %v1079
  %v1263 = vunpack.c.h.b16 %v1079
  %v1264 = vunpack.c.l.b16 %v1080
  %v1265 = vunpack.c.h.b16 %v1080
  %v1266 = vunpack.c.l.b16 %v1081
  %v1267 = vunpack.c.h.b16 %v1081
  %v1268 = vunpack.c.l.b16 %v1082
  %v1269 = vunpack.c.h.b16 %v1082
  %v1270 = vunpack.c.l.b16 %v1083
  %v1271 = vunpack.c.h.b16 %v1083
  %v1272 = vunpack.c.l.b16 %v1084
  %v1273 = vunpack.c.h.b16 %v1084
  %v1274 = vunpack.c.l.b16 %v1085
  %v1275 = vunpack.c.h.b16 %v1085
  %v1276 = vunpack.c.l.b16 %v1086
  %v1277 = vunpack.c.h.b16 %v1086
  %v1278 = vunpack.c.l.b16 %v1087
  %v1279 = vunpack.c.h.b16 %v1087
  %v1280 = vunpack.c.l.b16 %v1088
  %v1281 = vunpack.c.h.b16 %v1088
  %v1282 = vunpack.c.l.b16 %v1089
  %v1283 = vunpack.c.h.b16 %v1089
  %v1284 = vunpack.c.l.b16 %v1090
  %v1285 = vunpack.c.h.b16 %v1090
  %v1286 = vunpack.c.l.b16 %v1091
  %v1287 = vunpack.c.h.b16 %v1091
  %v1288 = vunpack.c.l.b16 %v1092
  %v1289 = vunpack.c.h.b16 %v1092
  %v1290 = vunpack.c.l.b16 %v1093
  %v1291 = vunpack.c.h.b16 %v1093
  %v1292 = vunpack.c.l.b16 %v1094
  %v1293 = vunpack.c.h.b16 %v1094
  %v1294 = vunpack.c.l.b16 %v1095
  %v1295 = vunpack.c.h.b16 %v1095
  %v1296 = vunpack.c.l.b16 %v1096
  %v1297 = vunpack.c.h.b16 %v1096
  %v1298 = vunpack.c.l.b16 %v1097
  %v1299 = vunpack.c.h.b16 %v1097
  %v1300 = vunpack.c.l.b16 %v1098
  %v1301 = vunpack.c.h.b16 %v1098
  %v1302 = vunpack.c.l.b16 %v1099
  %v1303 = vunpack.c.h.b16 %v1099
  %v1304 = vunpack.c.l.b16 %v1100
  %v1305 = vunpack.c.h.b16 %v1100
  %v1306 = vunpack.c.l.b16 %v1101
  %v1307 = vunpack.c.h.b16 %v1101
  %v1308 = vunpack.c.l.b16 %v1102
  %v1309 = vunpack.c.h.b16 %v1102
  %v1310 = vunpack.c.l.b16 %v1103
  %v1311 = vunpack.c.h.b16 %v1103
  %v1312 = vunpack.c.l.b16 %v1104
  %v1313 = vunpack.c.h.b16 %v1104
  %v1314 = vunpack.c.l.b16 %v1105
  %v1315 = vunpack.c.h.b16 %v1105
  %v1316 = vunpack.c.l.b16 %v1106
  %v1317 = vunpack.c.h.b16 %v1106
  %v1318 = vunpack.c.l.b16 %v1107
  %v1319 = vunpack.c.h.b16 %v1107
  %v1320 = vunpack.c.l.b16 %v1108
  %v1321 = vunpack.c.h.b16 %v1108
  %v1322 = vunpack.c.l.b16 %v1109
  %v1323 = vunpack.c.h.b16 %v1109
  %v1324 = vpack.c.b16 %v1200, %v1196
  %v1325 = vpack.c.b16 %v1201, %v1197
  %v1326 = vpack.c.b16 %v1202, %v1198
  %v1327 = vpack.c.b16 %v1203, %v1199
  %v1328 = vpack.c.b16 %v1208, %v1204
  %v1329 = vpack.c.b16 %v1209, %v1205
  %v1330 = vpack.c.b16 %v1210, %v1206
  %v1331 = vpack.c.b16 %v1211, %v1207
  %v1332 = vpack.c.b16 %v1216, %v1212
  %v1333 = vpack.c.b16 %v1217, %v1213
  %v1334 = vpack.c.b16 %v1218, %v1214
  %v1335 = vpack.c.b16 %v1219, %v1215
  %v1336 = vpack.c.b16 %v1224, %v1220
  %v1337 = vpack.c.b16 %v1225, %v1221
  %v1338 = vpack.c.b16 %v1226, %v1222
  %v1339 = vpack.c.b16 %v1227, %v1223
  %v1340 = vpack.c.b16 %v1232, %v1228
  %v1341 = vpack.c.b16 %v1233, %v1229
  %v1342 = vpack.c.b16 %v1234, %v1230
  %v1343 = vpack.c.b16 %v1235, %v1231
  %v1344 = vpack.c.b16 %v1240, %v1236
  %v1345 = vpack.c.b16 %v1241, %v1237
  %v1346 = vpack.c.b16 %v1242, %v1238
  %v1347 = vpack.c.b16 %v1243, %v1239
  %v1348 = vpack.c.b16 %v1248, %v1244
  %v1349 = vpack.c.b16 %v1249, %v1245
  %v1350 = vpack.c.b16 %v1250, %v1246
  %v1351 = vpack.c.b16 %v1251, %v1247
  %v1352 = vpack.c.b16 %v1256, %v1252
  %v1353 = vpack.c.b16 %v1257, %v1253
  %v1354 = vpack.c.b16 %v1258, %v1254
  %v1355 = vpack.c.b16 %v1259, %v1255
  %v1356 = vpack.c.b16 %v1264, %v1260
  %v1357 = vpack.c.b16 %v1265, %v1261
  %v1358 = vpack.c.b16 %v1266, %v1262
  %v1359 = vpack.c.b16 %v1267, %v1263
  %v1360 = vpack.c.b16 %v1272, %v1268
  %v1361 = vpack.c.b16 %v1273, %v1269
  %v1362 = vpack.c.b16 %v1274, %v1270
  %v1363 = vpack.c.b16 %v1275, %v1271
  %v1364 = vpack.c.b16 %v1280, %v1276
  %v1365 = vpack.c.b16 %v1281, %v1277
  %v1366 = vpack.c.b16 %v1282, %v1278
  %v1367 = vpack.c.b16 %v1283, %v1279
  %v1368 = vpack.c.b16 %v1288, %v1284
  %v1369 = vpack.c.b16 %v1289, %v1285
  %v1370 = vpack.c.b16 %v1290, %v1286
  %v1371 = vpack.c.b16 %v1291, %v1287
  %v1372 = vpack.c.b16 %v1296, %v1292
  %v1373 = vpack.c.b16 %v1297, %v1293
  %v1374 = vpack.c.b16 %v1298, %v1294
  %v1375 = vpack.c.b16 %v1299, %v1295
  %v1376 = vpack.c.b16 %v1304, %v1300
  %v1377 = vpack.c.b16 %v1305, %v1301
  %v1378 = vpack.c.b16 %v1306, %v1302
  %v1379 = vpack.c.b16 %v1307, %v1303
  %v1380 = vpack.c.b16 %v1312, %v1308
  %v1381 = vpack.c.b16 %v1313, %v1309
  %v1382 = vpack.c.b16 %v1314, %v1310
  %v1383 = vpack.c.b16 %v1315, %v1311
  %v1384 = vpack.c.b16 %v1320, %v1316
  %v1385 = vpack.c.b16 %v1321, %v1317
  %v1386 = vpack.c.b16 %v1322, %v1318
  %v1387 = vpack.c.b16 %v1323, %v1319
  %1452 = vmatprep.subr.bf16.mxu0 %v1325
  %1453 = vmatpush1.bf16.msra.mxu0 %v1324
  %1454 = vmatprep.subr.bf16.mxu0 %v1329
  %1455 = vmatpush1.bf16.msra.mxu0 %v1328
  %1456 = vmatprep.subr.bf16.mxu0 %v1333
  %1457 = vmatpush1.bf16.msra.mxu0 %v1332
  %1458 = vmatprep.subr.bf16.mxu0 %v1337
  %1459 = vmatpush1.bf16.msra.mxu0 %v1336
  %1460 = vmatprep.subr.bf16.mxu0 %v1341
  %1461 = vmatpush1.bf16.msra.mxu0 %v1340
  %1462 = vmatprep.subr.bf16.mxu0 %v1345
  %1463 = vmatpush1.bf16.msra.mxu0 %v1344
  %1464 = vmatprep.subr.bf16.mxu0 %v1349
  %1465 = vmatpush1.bf16.msra.mxu0 %v1348
  %1466 = vmatprep.subr.bf16.mxu0 %v1353
  %1467 = vmatpush1.bf16.msra.mxu0 %v1352
  %1468 = vmatprep.subr.bf16.mxu0 %v1357
  %1469 = vmatpush1.bf16.msra.mxu0 %v1356
  %1470 = vmatprep.subr.bf16.mxu0 %v1361
  %1471 = vmatpush1.bf16.msra.mxu0 %v1360
  %1472 = vmatprep.subr.bf16.mxu0 %v1365
  %1473 = vmatpush1.bf16.msra.mxu0 %v1364
  %1474 = vmatprep.subr.bf16.mxu0 %v1369
  %1475 = vmatpush1.bf16.msra.mxu0 %v1368
  %1476 = vmatprep.subr.bf16.mxu0 %v1373
  %1477 = vmatpush1.bf16.msra.mxu0 %v1372
  %1478 = vmatprep.subr.bf16.mxu0 %v1377
  %1479 = vmatpush1.bf16.msra.mxu0 %v1376
  %1480 = vmatprep.subr.bf16.mxu0 %v1381
  %1481 = vmatpush1.bf16.msra.mxu0 %v1380
  %1482 = vmatprep.subr.bf16.mxu0 %v1385
  %1483 = vmatpush1.bf16.msra.mxu0 %v1384
  %1484 = vmatprep.mubr.bf16.mxu0 %v1045
  %1485 = vmatmul.mubr.bf16.gmra.mrb[0].mxu0 %v1044
  %v1486 = vpop.f32.mrb[0].mxu0
  %v1487 = vadd.f32 %v1115, %v1486
  %v1488 = vpop.f32.mrb[0].mxu0
  %v1489 = vadd.f32 %v1119, %v1488
  %v1490 = vpop.f32.mrb[0].mxu0
  %v1491 = vpop.f32.mrb[0].mxu0
  %1492 = vdwg.mxu0
  %1493 = vmatprep.subr.bf16.mxu0 %v1327
  %1494 = vmatpush1.bf16.msra.mxu0 %v1326
  %1495 = vmatprep.subr.bf16.mxu0 %v1331
  %1496 = vmatpush1.bf16.msra.mxu0 %v1330
  %1497 = vmatprep.subr.bf16.mxu0 %v1335
  %1498 = vmatpush1.bf16.msra.mxu0 %v1334
  %1499 = vmatprep.subr.bf16.mxu0 %v1339
  %1500 = vmatpush1.bf16.msra.mxu0 %v1338
  %1501 = vmatprep.subr.bf16.mxu0 %v1343
  %1502 = vmatpush1.bf16.msra.mxu0 %v1342
  %1503 = vmatprep.subr.bf16.mxu0 %v1347
  %1504 = vmatpush1.bf16.msra.mxu0 %v1346
  %1505 = vmatprep.subr.bf16.mxu0 %v1351
  %1506 = vmatpush1.bf16.msra.mxu0 %v1350
  %1507 = vmatprep.subr.bf16.mxu0 %v1355
  %1508 = vmatpush1.bf16.msra.mxu0 %v1354
  %1509 = vmatprep.subr.bf16.mxu0 %v1359
  %1510 = vmatpush1.bf16.msra.mxu0 %v1358
  %1511 = vmatprep.subr.bf16.mxu0 %v1363
  %1512 = vmatpush1.bf16.msra.mxu0 %v1362
  %1513 = vmatprep.subr.bf16.mxu0 %v1367
  %1514 = vmatpush1.bf16.msra.mxu0 %v1366
  %1515 = vmatprep.subr.bf16.mxu0 %v1371
  %1516 = vmatpush1.bf16.msra.mxu0 %v1370
  %1517 = vmatprep.subr.bf16.mxu0 %v1375
  %1518 = vmatpush1.bf16.msra.mxu0 %v1374
  %1519 = vmatprep.subr.bf16.mxu0 %v1379
  %1520 = vmatpush1.bf16.msra.mxu0 %v1378
  %1521 = vmatprep.subr.bf16.mxu0 %v1383
  %1522 = vmatpush1.bf16.msra.mxu0 %v1382
  %1523 = vmatprep.subr.bf16.mxu0 %v1387
  %1524 = vmatpush1.bf16.msra.mxu0 %v1386
  %1525 = vmatprep.mubr.bf16.mxu0 %v1045
  %1526 = vmatmul.mubr.bf16.gmra.mrb[0].mxu0 %v1044
  %v1527 = vpop.f32.mrb[0].mxu0
  %v1528 = vadd.f32 %v1123, %v1527
  %v1529 = vpop.f32.mrb[0].mxu0
  %v1530 = vadd.f32 %v1127, %v1529
  %v1531 = vpop.f32.mrb[0].mxu0
  %v1532 = vpop.f32.mrb[0].mxu0
  %1533 = vdwg.mxu0
  %v1534 = vmax.f32 %v1487, 0.0
  %v1535 = vmax.f32 %v1489, 0.0
  %v1536 = vmax.f32 %v1528, 0.0
  %v1537 = vmax.f32 %v1530, 0.0
  %v1538 = vpack.c.bf16 %v1534, %v1534
  %v1539 = vpack.c.bf16 %v1535, %v1535
  %v1540 = vpack.c.bf16 %v1536, %v1536
  %v1541 = vpack.c.bf16 %v1537, %v1537
  %v1542 = vld [vmem:[%s6] sm:$0xff]
  %v1543 = vld [vmem:[%s6 + $0x8] sm:$0xff]
  %v1544 = vld [vmem:[%s6 + $0x10] sm:$0xff]
  %v1545 = vld [vmem:[%s6 + $0x18] sm:$0xff]
  %v1546 = vld [vmem:[%s6 + $0x20] sm:$0xff]
  %v1547 = vld [vmem:[%s6 + $0x28] sm:$0xff]
  %v1548 = vld [vmem:[%s6 + $0x30] sm:$0xff]
  %v1549 = vld [vmem:[%s6 + $0x38] sm:$0xff]
  %v1550 = vld [vmem:[%s6 + $0x40] sm:$0xff]
  %v1551 = vld [vmem:[%s6 + $0x48] sm:$0xff]
  %v1552 = vld [vmem:[%s6 + $0x50] sm:$0xff]
  %v1553 = vld [vmem:[%s6 + $0x58] sm:$0xff]
  %v1554 = vld [vmem:[%s6 + $0x60] sm:$0xff]
  %v1555 = vld [vmem:[%s6 + $0x68] sm:$0xff]
  %v1556 = vld [vmem:[%s6 + $0x70] sm:$0xff]
  %v1557 = vld [vmem:[%s6 + $0x78] sm:$0xff]
  %v1558 = vld [vmem:[%s6 + $0x80] sm:$0xff]
  %v1559 = vld [vmem:[%s6 + $0x88] sm:$0xff]
  %v1560 = vld [vmem:[%s6 + $0x90] sm:$0xff]
  %v1561 = vld [vmem:[%s6 + $0x98] sm:$0xff]
  %v1562 = vld [vmem:[%s6 + $0xa0] sm:$0xff]
  %v1563 = vld [vmem:[%s6 + $0xa8] sm:$0xff]
  %v1564 = vld [vmem:[%s6 + $0xb0] sm:$0xff]
  %v1565 = vld [vmem:[%s6 + $0xb8] sm:$0xff]
  %v1566 = vld [vmem:[%s6 + $0xc0] sm:$0xff]
  %v1567 = vld [vmem:[%s6 + $0xc8] sm:$0xff]
  %v1568 = vld [vmem:[%s6 + $0xd0] sm:$0xff]
  %v1569 = vld [vmem:[%s6 + $0xd8] sm:$0xff]
  %v1570 = vld [vmem:[%s6 + $0xe0] sm:$0xff]
  %v1571 = vld [vmem:[%s6 + $0xe8] sm:$0xff]
  %v1572 = vld [vmem:[%s6 + $0xf0] sm:$0xff]
  %v1573 = vld [vmem:[%s6 + $0xf8] sm:$0xff]
  %v1574 = vld [vmem:[%s6 + $0x100] sm:$0xff]
  %v1575 = vld [vmem:[%s6 + $0x108] sm:$0xff]
  %v1576 = vld [vmem:[%s6 + $0x110] sm:$0xff]
  %v1577 = vld [vmem:[%s6 + $0x118] sm:$0xff]
  %v1578 = vld [vmem:[%s6 + $0x120] sm:$0xff]
  %v1579 = vld [vmem:[%s6 + $0x128] sm:$0xff]
  %v1580 = vld [vmem:[%s6 + $0x130] sm:$0xff]
  %v1581 = vld [vmem:[%s6 + $0x138] sm:$0xff]
  %v1582 = vld [vmem:[%s6 + $0x140] sm:$0xff]
  %v1583 = vld [vmem:[%s6 + $0x148] sm:$0xff]
  %v1584 = vld [vmem:[%s6 + $0x150] sm:$0xff]
  %v1585 = vld [vmem:[%s6 + $0x158] sm:$0xff]
  %v1586 = vld [vmem:[%s6 + $0x160] sm:$0xff]
  %v1587 = vld [vmem:[%s6 + $0x168] sm:$0xff]
  %v1588 = vld [vmem:[%s6 + $0x170] sm:$0xff]
  %v1589 = vld [vmem:[%s6 + $0x178] sm:$0xff]
  %v1590 = vld [vmem:[%s6 + $0x180] sm:$0xff]
  %v1591 = vld [vmem:[%s6 + $0x188] sm:$0xff]
  %v1592 = vld [vmem:[%s6 + $0x190] sm:$0xff]
  %v1593 = vld [vmem:[%s6 + $0x198] sm:$0xff]
  %v1594 = vld [vmem:[%s6 + $0x1a0] sm:$0xff]
  %v1595 = vld [vmem:[%s6 + $0x1a8] sm:$0xff]
  %v1596 = vld [vmem:[%s6 + $0x1b0] sm:$0xff]
  %v1597 = vld [vmem:[%s6 + $0x1b8] sm:$0xff]
  %v1598 = vld [vmem:[%s6 + $0x1c0] sm:$0xff]
  %v1599 = vld [vmem:[%s6 + $0x1c8] sm:$0xff]
  %v1600 = vld [vmem:[%s6 + $0x1d0] sm:$0xff]
  %v1601 = vld [vmem:[%s6 + $0x1d8] sm:$0xff]
  %v1602 = vld [vmem:[%s6 + $0x1e0] sm:$0xff]
  %v1603 = vld [vmem:[%s6 + $0x1e8] sm:$0xff]
  %v1604 = vld [vmem:[%s6 + $0x1f0] sm:$0xff]
  %v1605 = vld [vmem:[%s6 + $0x1f8] sm:$0xff]
  %v1606 = vld [vmem:[%s8] sm:$0x3]
  %v1608 = vlaneseq
  %v1609 = vshrl.u32 %v1608, 7
  %v1610 = vsub.s32 0, %v1609
  %v1611 = vrot.slane %v1606, %v1610
  %v1612 = vlaneseq
  %v1613 = vshrl.u32 %v1612, 7
  %v1614 = vsub.s32 1, %v1613
  %v1615 = vrot.slane %v1606, %v1614
  %v1682 = vunpack.c.l.b16 %v1542
  %v1683 = vunpack.c.h.b16 %v1542
  %v1684 = vunpack.c.l.b16 %v1543
  %v1685 = vunpack.c.h.b16 %v1543
  %v1686 = vunpack.c.l.b16 %v1544
  %v1687 = vunpack.c.h.b16 %v1544
  %v1688 = vunpack.c.l.b16 %v1545
  %v1689 = vunpack.c.h.b16 %v1545
  %v1690 = vunpack.c.l.b16 %v1546
  %v1691 = vunpack.c.h.b16 %v1546
  %v1692 = vunpack.c.l.b16 %v1547
  %v1693 = vunpack.c.h.b16 %v1547
  %v1694 = vunpack.c.l.b16 %v1548
  %v1695 = vunpack.c.h.b16 %v1548
  %v1696 = vunpack.c.l.b16 %v1549
  %v1697 = vunpack.c.h.b16 %v1549
  %v1698 = vunpack.c.l.b16 %v1550
  %v1699 = vunpack.c.h.b16 %v1550
  %v1700 = vunpack.c.l.b16 %v1551
  %v1701 = vunpack.c.h.b16 %v1551
  %v1702 = vunpack.c.l.b16 %v1552
  %v1703 = vunpack.c.h.b16 %v1552
  %v1704 = vunpack.c.l.b16 %v1553
  %v1705 = vunpack.c.h.b16 %v1553
  %v1706 = vunpack.c.l.b16 %v1554
  %v1707 = vunpack.c.h.b16 %v1554
  %v1708 = vunpack.c.l.b16 %v1555
  %v1709 = vunpack.c.h.b16 %v1555
  %v1710 = vunpack.c.l.b16 %v1556
  %v1711 = vunpack.c.h.b16 %v1556
  %v1712 = vunpack.c.l.b16 %v1557
  %v1713 = vunpack.c.h.b16 %v1557
  %v1714 = vunpack.c.l.b16 %v1558
  %v1715 = vunpack.c.h.b16 %v1558
  %v1716 = vunpack.c.l.b16 %v1559
  %v1717 = vunpack.c.h.b16 %v1559
  %v1718 = vunpack.c.l.b16 %v1560
  %v1719 = vunpack.c.h.b16 %v1560
  %v1720 = vunpack.c.l.b16 %v1561
  %v1721 = vunpack.c.h.b16 %v1561
  %v1722 = vunpack.c.l.b16 %v1562
  %v1723 = vunpack.c.h.b16 %v1562
  %v1724 = vunpack.c.l.b16 %v1563
  %v1725 = vunpack.c.h.b16 %v1563
  %v1726 = vunpack.c.l.b16 %v1564
  %v1727 = vunpack.c.h.b16 %v1564
  %v1728 = vunpack.c.l.b16 %v1565
  %v1729 = vunpack.c.h.b16 %v1565
  %v1730 = vunpack.c.l.b16 %v1566
  %v1731 = vunpack.c.h.b16 %v1566
  %v1732 = vunpack.c.l.b16 %v1567
  %v1733 = vunpack.c.h.b16 %v1567
  %v1734 = vunpack.c.l.b16 %v1568
  %v1735 = vunpack.c.h.b16 %v1568
  %v1736 = vunpack.c.l.b16 %v1569
  %v1737 = vunpack.c.h.b16 %v1569
  %v1738 = vunpack.c.l.b16 %v1570
  %v1739 = vunpack.c.h.b16 %v1570
  %v1740 = vunpack.c.l.b16 %v1571
  %v1741 = vunpack.c.h.b16 %v1571
  %v1742 = vunpack.c.l.b16 %v1572
  %v1743 = vunpack.c.h.b16 %v1572
  %v1744 = vunpack.c.l.b16 %v1573
  %v1745 = vunpack.c.h.b16 %v1573
  %v1746 = vunpack.c.l.b16 %v1574
  %v1747 = vunpack.c.h.b16 %v1574
  %v1748 = vunpack.c.l.b16 %v1575
  %v1749 = vunpack.c.h.b16 %v1575
  %v1750 = vunpack.c.l.b16 %v1576
  %v1751 = vunpack.c.h.b16 %v1576
  %v1752 = vunpack.c.l.b16 %v1577
  %v1753 = vunpack.c.h.b16 %v1577
  %v1754 = vunpack.c.l.b16 %v1578
  %v1755 = vunpack.c.h.b16 %v1578
  %v1756 = vunpack.c.l.b16 %v1579
  %v1757 = vunpack.c.h.b16 %v1579
  %v1758 = vunpack.c.l.b16 %v1580
  %v1759 = vunpack.c.h.b16 %v1580
  %v1760 = vunpack.c.l.b16 %v1581
  %v1761 = vunpack.c.h.b16 %v1581
  %v1762 = vunpack.c.l.b16 %v1582
  %v1763 = vunpack.c.h.b16 %v1582
  %v1764 = vunpack.c.l.b16 %v1583
  %v1765 = vunpack.c.h.b16 %v1583
  %v1766 = vunpack.c.l.b16 %v1584
  %v1767 = vunpack.c.h.b16 %v1584
  %v1768 = vunpack.c.l.b16 %v1585
  %v1769 = vunpack.c.h.b16 %v1585
  %v1770 = vunpack.c.l.b16 %v1586
  %v1771 = vunpack.c.h.b16 %v1586
  %v1772 = vunpack.c.l.b16 %v1587
  %v1773 = vunpack.c.h.b16 %v1587
  %v1774 = vunpack.c.l.b16 %v1588
  %v1775 = vunpack.c.h.b16 %v1588
  %v1776 = vunpack.c.l.b16 %v1589
  %v1777 = vunpack.c.h.b16 %v1589
  %v1778 = vunpack.c.l.b16 %v1590
  %v1779 = vunpack.c.h.b16 %v1590
  %v1780 = vunpack.c.l.b16 %v1591
  %v1781 = vunpack.c.h.b16 %v1591
  %v1782 = vunpack.c.l.b16 %v1592
  %v1783 = vunpack.c.h.b16 %v1592
  %v1784 = vunpack.c.l.b16 %v1593
  %v1785 = vunpack.c.h.b16 %v1593
  %v1786 = vunpack.c.l.b16 %v1594
  %v1787 = vunpack.c.h.b16 %v1594
  %v1788 = vunpack.c.l.b16 %v1595
  %v1789 = vunpack.c.h.b16 %v1595
  %v1790 = vunpack.c.l.b16 %v1596
  %v1791 = vunpack.c.h.b16 %v1596
  %v1792 = vunpack.c.l.b16 %v1597
  %v1793 = vunpack.c.h.b16 %v1597
  %v1794 = vunpack.c.l.b16 %v1598
  %v1795 = vunpack.c.h.b16 %v1598
  %v1796 = vunpack.c.l.b16 %v1599
  %v1797 = vunpack.c.h.b16 %v1599
  %v1798 = vunpack.c.l.b16 %v1600
  %v1799 = vunpack.c.h.b16 %v1600
  %v1800 = vunpack.c.l.b16 %v1601
  %v1801 = vunpack.c.h.b16 %v1601
  %v1802 = vunpack.c.l.b16 %v1602
  %v1803 = vunpack.c.h.b16 %v1602
  %v1804 = vunpack.c.l.b16 %v1603
  %v1805 = vunpack.c.h.b16 %v1603
  %v1806 = vunpack.c.l.b16 %v1604
  %v1807 = vunpack.c.h.b16 %v1604
  %v1808 = vunpack.c.l.b16 %v1605
  %v1809 = vunpack.c.h.b16 %v1605
  %v1810 = vpack.c.b16 %v1684, %v1682
  %v1811 = vpack.c.b16 %v1685, %v1683
  %v1812 = vpack.c.b16 %v1688, %v1686
  %v1813 = vpack.c.b16 %v1689, %v1687
  %v1814 = vpack.c.b16 %v1692, %v1690
  %v1815 = vpack.c.b16 %v1693, %v1691
  %v1816 = vpack.c.b16 %v1696, %v1694
  %v1817 = vpack.c.b16 %v1697, %v1695
  %v1818 = vpack.c.b16 %v1700, %v1698
  %v1819 = vpack.c.b16 %v1701, %v1699
  %v1820 = vpack.c.b16 %v1704, %v1702
  %v1821 = vpack.c.b16 %v1705, %v1703
  %v1822 = vpack.c.b16 %v1708, %v1706
  %v1823 = vpack.c.b16 %v1709, %v1707
  %v1824 = vpack.c.b16 %v1712, %v1710
  %v1825 = vpack.c.b16 %v1713, %v1711
  %v1826 = vpack.c.b16 %v1716, %v1714
  %v1827 = vpack.c.b16 %v1717, %v1715
  %v1828 = vpack.c.b16 %v1720, %v1718
  %v1829 = vpack.c.b16 %v1721, %v1719
  %v1830 = vpack.c.b16 %v1724, %v1722
  %v1831 = vpack.c.b16 %v1725, %v1723
  %v1832 = vpack.c.b16 %v1728, %v1726
  %v1833 = vpack.c.b16 %v1729, %v1727
  %v1834 = vpack.c.b16 %v1732, %v1730
  %v1835 = vpack.c.b16 %v1733, %v1731
  %v1836 = vpack.c.b16 %v1736, %v1734
  %v1837 = vpack.c.b16 %v1737, %v1735
  %v1838 = vpack.c.b16 %v1740, %v1738
  %v1839 = vpack.c.b16 %v1741, %v1739
  %v1840 = vpack.c.b16 %v1744, %v1742
  %v1841 = vpack.c.b16 %v1745, %v1743
  %v1842 = vpack.c.b16 %v1748, %v1746
  %v1843 = vpack.c.b16 %v1749, %v1747
  %v1844 = vpack.c.b16 %v1752, %v1750
  %v1845 = vpack.c.b16 %v1753, %v1751
  %v1846 = vpack.c.b16 %v1756, %v1754
  %v1847 = vpack.c.b16 %v1757, %v1755
  %v1848 = vpack.c.b16 %v1760, %v1758
  %v1849 = vpack.c.b16 %v1761, %v1759
  %v1850 = vpack.c.b16 %v1764, %v1762
  %v1851 = vpack.c.b16 %v1765, %v1763
  %v1852 = vpack.c.b16 %v1768, %v1766
  %v1853 = vpack.c.b16 %v1769, %v1767
  %v1854 = vpack.c.b16 %v1772, %v1770
  %v1855 = vpack.c.b16 %v1773, %v1771
  %v1856 = vpack.c.b16 %v1776, %v1774
  %v1857 = vpack.c.b16 %v1777, %v1775
  %v1858 = vpack.c.b16 %v1780, %v1778
  %v1859 = vpack.c.b16 %v1781, %v1779
  %v1860 = vpack.c.b16 %v1784, %v1782
  %v1861 = vpack.c.b16 %v1785, %v1783
  %v1862 = vpack.c.b16 %v1788, %v1786
  %v1863 = vpack.c.b16 %v1789, %v1787
  %v1864 = vpack.c.b16 %v1792, %v1790
  %v1865 = vpack.c.b16 %v1793, %v1791
  %v1866 = vpack.c.b16 %v1796, %v1794
  %v1867 = vpack.c.b16 %v1797, %v1795
  %v1868 = vpack.c.b16 %v1800, %v1798
  %v1869 = vpack.c.b16 %v1801, %v1799
  %v1870 = vpack.c.b16 %v1804, %v1802
  %v1871 = vpack.c.b16 %v1805, %v1803
  %v1872 = vpack.c.b16 %v1808, %v1806
  %v1873 = vpack.c.b16 %v1809, %v1807
  %1938 = vmatprep.subr.bf16.mxu0 %v1811
  %1939 = vmatpush1.bf16.msra.mxu0 %v1810
  %1940 = vmatprep.subr.bf16.mxu0 %v1813
  %1941 = vmatpush1.bf16.msra.mxu0 %v1812
  %1942 = vmatprep.subr.bf16.mxu0 %v1815
  %1943 = vmatpush1.bf16.msra.mxu0 %v1814
  %1944 = vmatprep.subr.bf16.mxu0 %v1817
  %1945 = vmatpush1.bf16.msra.mxu0 %v1816
  %1946 = vmatprep.subr.bf16.mxu0 %v1819
  %1947 = vmatpush1.bf16.msra.mxu0 %v1818
  %1948 = vmatprep.subr.bf16.mxu0 %v1821
  %1949 = vmatpush1.bf16.msra.mxu0 %v1820
  %1950 = vmatprep.subr.bf16.mxu0 %v1823
  %1951 = vmatpush1.bf16.msra.mxu0 %v1822
  %1952 = vmatprep.subr.bf16.mxu0 %v1825
  %1953 = vmatpush1.bf16.msra.mxu0 %v1824
  %1954 = vmatprep.subr.bf16.mxu0 %v1827
  %1955 = vmatpush1.bf16.msra.mxu0 %v1826
  %1956 = vmatprep.subr.bf16.mxu0 %v1829
  %1957 = vmatpush1.bf16.msra.mxu0 %v1828
  %1958 = vmatprep.subr.bf16.mxu0 %v1831
  %1959 = vmatpush1.bf16.msra.mxu0 %v1830
  %1960 = vmatprep.subr.bf16.mxu0 %v1833
  %1961 = vmatpush1.bf16.msra.mxu0 %v1832
  %1962 = vmatprep.subr.bf16.mxu0 %v1835
  %1963 = vmatpush1.bf16.msra.mxu0 %v1834
  %1964 = vmatprep.subr.bf16.mxu0 %v1837
  %1965 = vmatpush1.bf16.msra.mxu0 %v1836
  %1966 = vmatprep.subr.bf16.mxu0 %v1839
  %1967 = vmatpush1.bf16.msra.mxu0 %v1838
  %1968 = vmatprep.subr.bf16.mxu0 %v1841
  %1969 = vmatpush1.bf16.msra.mxu0 %v1840
  %1970 = vmatprep.mubr.bf16.mxu0 %v1539
  %1971 = vmatmul.mubr.bf16.gmra.mrb[0].mxu0 %v1538
  %v1972 = vpop.f32.mrb[0].mxu0
  %v1973 = vadd.f32 %v1611, %v1972
  %v1974 = vpop.f32.mrb[0].mxu0
  %v1975 = vadd.f32 %v1615, %v1974
  %v1976 = vpop.f32.mrb[0].mxu0
  %v1977 = vpop.f32.mrb[0].mxu0
  %1978 = vdwg.mxu0
  %1979 = vmatprep.subr.bf16.mxu0 %v1843
  %1980 = vmatpush1.bf16.msra.mxu0 %v1842
  %1981 = vmatprep.subr.bf16.mxu0 %v1845
  %1982 = vmatpush1.bf16.msra.mxu0 %v1844
  %1983 = vmatprep.subr.bf16.mxu0 %v1847
  %1984 = vmatpush1.bf16.msra.mxu0 %v1846
  %1985 = vmatprep.subr.bf16.mxu0 %v1849
  %1986 = vmatpush1.bf16.msra.mxu0 %v1848
  %1987 = vmatprep.subr.bf16.mxu0 %v1851
  %1988 = vmatpush1.bf16.msra.mxu0 %v1850
  %1989 = vmatprep.subr.bf16.mxu0 %v1853
  %1990 = vmatpush1.bf16.msra.mxu0 %v1852
  %1991 = vmatprep.subr.bf16.mxu0 %v1855
  %1992 = vmatpush1.bf16.msra.mxu0 %v1854
  %1993 = vmatprep.subr.bf16.mxu0 %v1857
  %1994 = vmatpush1.bf16.msra.mxu0 %v1856
  %1995 = vmatprep.subr.bf16.mxu0 %v1859
  %1996 = vmatpush1.bf16.msra.mxu0 %v1858
  %1997 = vmatprep.subr.bf16.mxu0 %v1861
  %1998 = vmatpush1.bf16.msra.mxu0 %v1860
  %1999 = vmatprep.subr.bf16.mxu0 %v1863
  %2000 = vmatpush1.bf16.msra.mxu0 %v1862
  %2001 = vmatprep.subr.bf16.mxu0 %v1865
  %2002 = vmatpush1.bf16.msra.mxu0 %v1864
  %2003 = vmatprep.subr.bf16.mxu0 %v1867
  %2004 = vmatpush1.bf16.msra.mxu0 %v1866
  %2005 = vmatprep.subr.bf16.mxu0 %v1869
  %2006 = vmatpush1.bf16.msra.mxu0 %v1868
  %2007 = vmatprep.subr.bf16.mxu0 %v1871
  %2008 = vmatpush1.bf16.msra.mxu0 %v1870
  %2009 = vmatprep.subr.bf16.mxu0 %v1873
  %2010 = vmatpush1.bf16.msra.mxu0 %v1872
  %2011 = vmatprep.mubr.bf16.mxu0 %v1541
  %2012 = vmatmul.mubr.bf16.gmra.mrb[0].mxu0 %v1540
  %v2013 = vpop.f32.mrb[0].mxu0
  %v2014 = vadd.f32 %v1973, %v2013
  %v2015 = vpop.f32.mrb[0].mxu0
  %v2016 = vadd.f32 %v1975, %v2015
  %v2017 = vpop.f32.mrb[0].mxu0
  %v2018 = vpop.f32.mrb[0].mxu0
  %2019 = vdwg.mxu0
  %v2020 = vld [vmem:[%s1] sm:$0x3]
  %v2021 = vld [vmem:[%s7] ss:$4 sm:$0x3]
  %2023 = vset.pattern.permute.xlu0 0
  %2024 = vperm.xlu0 %2023, %v2020
  %v2025 = vpop.permute.xlu0 %2024
  %v2028 = vlaneseq
  %v2029 = vshrl.u32 %v2028, 7
  %v2030 = vsub.s32 0, %v2029
  %v2031 = vrot.slane %v2021, %v2030
  %v2032 = vlaneseq
  %v2033 = vshrl.u32 %v2032, 7
  %v2034 = vsub.s32 1, %v2033
  %v2035 = vrot.slane %v2021, %v2034
  %v2038 = vmul.f32 %v2025, %v2031
  %v2039 = vmul.f32 %v2025, %v2035
  %v2040 = vadd.f32 %v2014, %v2038
  %v2041 = vadd.f32 %v2016, %v2039
  %s2042 = scalar_lea.vmem %s7, 1
  %v2043 = vld [vmem:[%s2042] ss:$4 sm:$0x3]
  %2044 = vset.pattern.permute.xlu0 1
  %2045 = vperm.xlu0 %2044, %v2020
  %v2046 = vpop.permute.xlu0 %2045
  %v2049 = vlaneseq
  %v2050 = vshrl.u32 %v2049, 7
  %v2051 = vsub.s32 0, %v2050
  %v2052 = vrot.slane %v2043, %v2051
  %v2053 = vlaneseq
  %v2054 = vshrl.u32 %v2053, 7
  %v2055 = vsub.s32 1, %v2054
  %v2056 = vrot.slane %v2043, %v2055
  %v2059 = vmul.f32 %v2046, %v2052
  %v2060 = vmul.f32 %v2046, %v2056
  %v2061 = vadd.f32 %v2040, %v2059
  %v2062 = vadd.f32 %v2041, %v2060
  %s2063 = scalar_lea.vmem %s7, 2
  %v2064 = vld [vmem:[%s2063] ss:$4 sm:$0x3]
  %2065 = vset.pattern.permute.xlu0 2
  %2066 = vperm.xlu0 %2065, %v2020
  %v2067 = vpop.permute.xlu0 %2066
  %v2070 = vlaneseq
  %v2071 = vshrl.u32 %v2070, 7
  %v2072 = vsub.s32 0, %v2071
  %v2073 = vrot.slane %v2064, %v2072
  %v2074 = vlaneseq
  %v2075 = vshrl.u32 %v2074, 7
  %v2076 = vsub.s32 1, %v2075
  %v2077 = vrot.slane %v2064, %v2076
  %v2080 = vmul.f32 %v2067, %v2073
  %v2081 = vmul.f32 %v2067, %v2077
  %v2082 = vadd.f32 %v2061, %v2080
  %v2083 = vadd.f32 %v2062, %v2081
  %v2084 = vmax.f32 %v2082, 0.0
  %v2085 = vmax.f32 %v2083, 0.0
  %v2086 = vpack.c.bf16 %v2084, %v2084
  %v2087 = vpack.c.bf16 %v2085, %v2085
  %v2088 = vld [vmem:[%s9] sm:$0xf]
  %v2089 = vld [vmem:[%s9 + $0x4] sm:$0xf]
  %v2090 = vld [vmem:[%s9 + $0x8] sm:$0xf]
  %v2091 = vld [vmem:[%s9 + $0xc] sm:$0xf]
  %v2092 = vld [vmem:[%s9 + $0x10] sm:$0xf]
  %v2093 = vld [vmem:[%s9 + $0x14] sm:$0xf]
  %v2094 = vld [vmem:[%s9 + $0x18] sm:$0xf]
  %v2095 = vld [vmem:[%s9 + $0x1c] sm:$0xf]
  %v2096 = vld [vmem:[%s9 + $0x20] sm:$0xf]
  %v2097 = vld [vmem:[%s9 + $0x24] sm:$0xf]
  %v2098 = vld [vmem:[%s9 + $0x28] sm:$0xf]
  %v2099 = vld [vmem:[%s9 + $0x2c] sm:$0xf]
  %v2100 = vld [vmem:[%s9 + $0x30] sm:$0xf]
  %v2101 = vld [vmem:[%s9 + $0x34] sm:$0xf]
  %v2102 = vld [vmem:[%s9 + $0x38] sm:$0xf]
  %v2103 = vld [vmem:[%s9 + $0x3c] sm:$0xf]
  %v2104 = vld [vmem:[%s9 + $0x40] sm:$0xf]
  %v2105 = vld [vmem:[%s9 + $0x44] sm:$0xf]
  %v2106 = vld [vmem:[%s9 + $0x48] sm:$0xf]
  %v2107 = vld [vmem:[%s9 + $0x4c] sm:$0xf]
  %v2108 = vld [vmem:[%s9 + $0x50] sm:$0xf]
  %v2109 = vld [vmem:[%s9 + $0x54] sm:$0xf]
  %v2110 = vld [vmem:[%s9 + $0x58] sm:$0xf]
  %v2111 = vld [vmem:[%s9 + $0x5c] sm:$0xf]
  %v2112 = vld [vmem:[%s9 + $0x60] sm:$0xf]
  %v2113 = vld [vmem:[%s9 + $0x64] sm:$0xf]
  %v2114 = vld [vmem:[%s9 + $0x68] sm:$0xf]
  %v2115 = vld [vmem:[%s9 + $0x6c] sm:$0xf]
  %v2116 = vld [vmem:[%s9 + $0x70] sm:$0xf]
  %v2117 = vld [vmem:[%s9 + $0x74] sm:$0xf]
  %v2118 = vld [vmem:[%s9 + $0x78] sm:$0xf]
  %v2119 = vld [vmem:[%s9 + $0x7c] sm:$0xf]
  %v2120 = vld [vmem:[%s10] sm:$0x1]
  %v2122 = vlaneseq
  %v2123 = vshrl.u32 %v2122, 7
  %v2124 = vsub.s32 0, %v2123
  %v2125 = vrot.slane %v2120, %v2124
  %v2159 = vunpack.c.l.b16 %v2088
  %v2160 = vunpack.c.l.b16 %v2089
  %v2161 = vunpack.c.l.b16 %v2090
  %v2162 = vunpack.c.l.b16 %v2091
  %v2163 = vunpack.c.l.b16 %v2092
  %v2164 = vunpack.c.l.b16 %v2093
  %v2165 = vunpack.c.l.b16 %v2094
  %v2166 = vunpack.c.l.b16 %v2095
  %v2167 = vunpack.c.l.b16 %v2096
  %v2168 = vunpack.c.l.b16 %v2097
  %v2169 = vunpack.c.l.b16 %v2098
  %v2170 = vunpack.c.l.b16 %v2099
  %v2171 = vunpack.c.l.b16 %v2100
  %v2172 = vunpack.c.l.b16 %v2101
  %v2173 = vunpack.c.l.b16 %v2102
  %v2174 = vunpack.c.l.b16 %v2103
  %v2175 = vunpack.c.l.b16 %v2104
  %v2176 = vunpack.c.l.b16 %v2105
  %v2177 = vunpack.c.l.b16 %v2106
  %v2178 = vunpack.c.l.b16 %v2107
  %v2179 = vunpack.c.l.b16 %v2108
  %v2180 = vunpack.c.l.b16 %v2109
  %v2181 = vunpack.c.l.b16 %v2110
  %v2182 = vunpack.c.l.b16 %v2111
  %v2183 = vunpack.c.l.b16 %v2112
  %v2184 = vunpack.c.l.b16 %v2113
  %v2185 = vunpack.c.l.b16 %v2114
  %v2186 = vunpack.c.l.b16 %v2115
  %v2187 = vunpack.c.l.b16 %v2116
  %v2188 = vunpack.c.l.b16 %v2117
  %v2189 = vunpack.c.l.b16 %v2118
  %v2190 = vunpack.c.l.b16 %v2119
  %v2191 = vpack.c.b16 %v2160, %v2159
  %v2192 = vpack.c.b16 %v2162, %v2161
  %v2193 = vpack.c.b16 %v2164, %v2163
  %v2194 = vpack.c.b16 %v2166, %v2165
  %v2195 = vpack.c.b16 %v2168, %v2167
  %v2196 = vpack.c.b16 %v2170, %v2169
  %v2197 = vpack.c.b16 %v2172, %v2171
  %v2198 = vpack.c.b16 %v2174, %v2173
  %v2199 = vpack.c.b16 %v2176, %v2175
  %v2200 = vpack.c.b16 %v2178, %v2177
  %v2201 = vpack.c.b16 %v2180, %v2179
  %v2202 = vpack.c.b16 %v2182, %v2181
  %v2203 = vpack.c.b16 %v2184, %v2183
  %v2204 = vpack.c.b16 %v2186, %v2185
  %v2205 = vpack.c.b16 %v2188, %v2187
  %v2206 = vpack.c.b16 %v2190, %v2189
  %2223 = vmatprep.subr.bf16.mxu0 0
  %2224 = vmatpush1.bf16.msra.mxu0 %v2191
  %2225 = vmatprep.subr.bf16.mxu0 0
  %2226 = vmatpush1.bf16.msra.mxu0 %v2192
  %2227 = vmatprep.subr.bf16.mxu0 0
  %2228 = vmatpush1.bf16.msra.mxu0 %v2193
  %2229 = vmatprep.subr.bf16.mxu0 0
  %2230 = vmatpush1.bf16.msra.mxu0 %v2194
  %2231 = vmatprep.subr.bf16.mxu0 0
  %2232 = vmatpush1.bf16.msra.mxu0 %v2195
  %2233 = vmatprep.subr.bf16.mxu0 0
  %2234 = vmatpush1.bf16.msra.mxu0 %v2196
  %2235 = vmatprep.subr.bf16.mxu0 0
  %2236 = vmatpush1.bf16.msra.mxu0 %v2197
  %2237 = vmatprep.subr.bf16.mxu0 0
  %2238 = vmatpush1.bf16.msra.mxu0 %v2198
  %2239 = vmatprep.subr.bf16.mxu0 0
  %2240 = vmatpush1.bf16.msra.mxu0 %v2199
  %2241 = vmatprep.subr.bf16.mxu0 0
  %2242 = vmatpush1.bf16.msra.mxu0 %v2200
  %2243 = vmatprep.subr.bf16.mxu0 0
  %2244 = vmatpush1.bf16.msra.mxu0 %v2201
  %2245 = vmatprep.subr.bf16.mxu0 0
  %2246 = vmatpush1.bf16.msra.mxu0 %v2202
  %2247 = vmatprep.subr.bf16.mxu0 0
  %2248 = vmatpush1.bf16.msra.mxu0 %v2203
  %2249 = vmatprep.subr.bf16.mxu0 0
  %2250 = vmatpush1.bf16.msra.mxu0 %v2204
  %2251 = vmatprep.subr.bf16.mxu0 0
  %2252 = vmatpush1.bf16.msra.mxu0 %v2205
  %2253 = vmatprep.subr.bf16.mxu0 0
  %2254 = vmatpush1.bf16.msra.mxu0 %v2206
  %2255 = vmatprep.mubr.bf16.mxu0 %v2087
  %2256 = vmatmul.mubr.bf16.gmra.mrb[0].mxu0 %v2086
  %v2257 = vpop.f32.mrb[0].mxu0
  %v2258 = vadd.f32 %v2125, %v2257
  %v2259 = vpop.f32.mrb[0].mxu0
  %v2260 = vpop.f32.mrb[0].mxu0
  %v2261 = vpop.f32.mrb[0].mxu0
  %2262 = vdwg.mxu0
  %2263 = vst [vmem:[%s11] sm:$0x3] %v2258
  // Predicated region
  $region46: #{dueling_dqn_forward.1} parent=0 // pred_check
    _
  $region47: #{dueling_dqn_forward.1} parent=0 // pred_check_branch
    %2265 = sbr.rel (0) target = $region49
  $region48: #{dueling_dqn_forward.1} parent=0 // pred_region
    _
  $region49: #{dueling_dqn_forward.1} parent=0 // pred_fallthru
    _
  // Predicated region
  $region50: #{dueling_dqn_forward.1} parent=0 // pred_check
    _
  $region51: #{dueling_dqn_forward.1} parent=0 // pred_check_branch
    %2267 = sbr.rel (0) target = $region53
  $region52: #{dueling_dqn_forward.1} parent=0 // pred_region
    _
  $region53: #{dueling_dqn_forward.1} parent=0 // pred_fallthru
    _

</llo_original>
